<compile_context>
chip_gen: v7x
topology: tpu7x:2x2x1
jax: 0.10.0
libtpu: 0.0.40
codegen_flags: <defaults>
</compile_context>

<pallas_src>
import functools

import jax
import jax.numpy as jnp
from jax.experimental import pallas as pl
from jax.experimental.pallas import tpu as pltpu


def _rms_norm(x, w, eps):
    # matches RMSNorm.forward: x * rsqrt(mean(x^2, -1) + eps) * weight (f32)
    norm = jax.lax.rsqrt(jnp.mean(x * x, axis=-1, keepdims=True) + eps)
    return x * norm * w


def cross_attention_kernel(
    x_ref, ctx_ref,
    qw_ref, qb_ref, kvw_ref, kvb_ref, ow_ref, ob_ref,
    nq_ref, nk_ref,
    o_ref,
    *, num_heads, head_dim, scale, qk_norm, batch_block, seq_len, ctx_len,
    eps, approx_recip,
):
    H, hd = num_heads, head_dim
    Bt, S, L = batch_block, seq_len, ctx_len
    D = H * hd

    # Inputs arrive pre-flattened: x (Bt*S, D), ctx (Bt*L, Dc) -> one bulk,
    # lane-dense load each (no per-batch slicing/concat inside the kernel).
    x16 = x_ref[...].astype(jnp.bfloat16)
    c16 = ctx_ref[...].astype(jnp.bfloat16)

    # Projections: bf16 MXU inputs, f32 accumulation.  K and V share one
    # fused (Dc, 2D) weight so the context rows make a single MXU pass.
    q = jnp.dot(x16, qw_ref[...], preferred_element_type=jnp.float32) + qb_ref[0]
    kv = jnp.dot(c16, kvw_ref[...], preferred_element_type=jnp.float32) + kvb_ref[0]
    k = kv[:, :D]
    v = kv[:, D:]

    if qk_norm:
        q = _rms_norm(q, nq_ref[0], eps)
        k = _rms_norm(k, nk_ref[0], eps)

    # Fold 1/sqrt(head_dim) into q once (cheaper than scaling (S, L) scores).
    q = q * scale

    def split_heads(t, rows):
        # (Bt*rows, D) -> (Bt, rows, D): leading-dim split, lane dim unchanged
        # (free sublane reinterpretation when rows is 8-aligned).
        t3 = t.reshape(Bt, rows, D)
        # H lane slices stacked on a new leading axis -> (Bt, H, rows, hd),
        # then merge (Bt, H) into the batched-matmul axis.
        t4 = jnp.stack([t3[:, :, h * hd:(h + 1) * hd] for h in range(H)], axis=1)
        return t4.reshape(Bt * H, rows, hd).astype(jnp.bfloat16)

    qh = split_heads(q, S)   # (Bt*H, S, hd)
    kh = split_heads(k, L)   # (Bt*H, L, hd)
    vh = split_heads(v, L)   # (Bt*H, L, hd)

    # Scores: one batched contraction over the trailing hd axes.
    s = jax.lax.dot_general(
        qh, kh,
        dimension_numbers=(((2,), (2,)), ((0,), (0,))),
        preferred_element_type=jnp.float32)                  # (Bt*H, S, L)

    # Softmax in f32; EUP reciprocal (free slot) unless exact mode requested.
    # TODO(synk): for hd/L << 128 a head-packed lane-dense softmax layout
    # would cut the mostly-empty vreg passes further.
    m = jnp.max(s, axis=-1, keepdims=True)
    p = jnp.exp(s - m)
    denom = jnp.sum(p, axis=-1, keepdims=True)
    if approx_recip:
        p = p * pl.reciprocal(denom, approx=True)
    else:
        p = p / denom

    # PV: one batched matmul (Bt*H, S, L) x (Bt*H, L, hd) -> (Bt*H, S, hd).
    o = jax.lax.dot_general(
        p.astype(jnp.bfloat16), vh,
        dimension_numbers=(((2,), (1,)), ((0,), (0,))),
        preferred_element_type=jnp.float32)

    # Merge heads back to (Bt*S, D): H leading-index extracts + one lane
    # concat + one free leading-dim merge.
    o4 = o.reshape(Bt, H, S, hd)
    merged = jnp.concatenate([o4[:, h] for h in range(H)], axis=-1)  # (Bt, S, D)
    attn = merged.reshape(Bt * S, D).astype(jnp.bfloat16)

    out = jnp.dot(attn, ow_ref[...], preferred_element_type=jnp.float32) + ob_ref[0]

    # Single bulk store (unmasked sublane-dense path, one vst stream).
    o_ref[...] = out.astype(o_ref.dtype)


def _vmem_budget_bytes():
    """Generation-aware scoped-VMEM limit (~25% headroom under capacity)."""
    cap = None
    try:
        info = pltpu.get_tpu_info()
        cap = getattr(info, "vmem_capacity_bytes", None)
    except Exception:
        cap = None
    if not cap:
        cap = 64 * 1024 * 1024  # conservative default (v7x per-TC VMEM)
    return max(32 * 1024 * 1024, min(int(cap) * 3 // 4, 100 * 1024 * 1024))


def _step_bytes(Bt, S, L, D, Dc, H):
    """Rough per-grid-step VMEM footprint (double-buffered blocks + live values)."""
    f32, bf16 = 4, 2
    dbuf = 2
    io = dbuf * (Bt * S * D * f32)              # x block
    io += dbuf * (Bt * L * Dc * f32)            # context block
    io += dbuf * (Bt * S * D * f32)             # out block
    # NOTE: constant-index weight blocks are still double-buffered by the
    # pipeline; single-buffering them would roughly halve this term.
    w = dbuf * ((D * D + Dc * 2 * D + D * D) * bf16 + (6 * D) * f32)
    act = (Bt * S * D + 2 * Bt * L * D) * (f32 + bf16)      # q/k/v f32 + bf16 copies
    act += Bt * H * S * L * (2 * f32 + bf16)                # scores, p (f32 + bf16)
    act += Bt * S * D * (f32 + bf16)                        # merged attn out
    return io + w + act


def _pick_batch_block(B, S, L, D, Dc, H, vmem_budget):
    target = int(vmem_budget * 0.6)  # slack for compiler scratch / spills
    divisors = sorted({d for d in range(1, B + 1) if B % d == 0}, reverse=True)

    def ok_shape(bt):  # (8,128) rule on the block sublane dims
        return ((bt * S) % 8 == 0 or bt == B) and ((bt * L) % 8 == 0 or bt == B)

    def fits(bt):
        return _step_bytes(bt, S, L, D, Dc, H) <= target

    # Prefer: fits in VMEM, >=2 grid steps (work for both v7x TensorCores),
    # and the largest such batch tile (amortizes per-step pipeline overhead).
    for bt in divisors:
        if (B == 1 or B // bt >= 2) and ok_shape(bt) and fits(bt):
            return bt
    for bt in divisors:
        if ok_shape(bt) and fits(bt):
            return bt
    for bt in divisors:
        if ok_shape(bt):
            return bt
    return B


def cross_attention(x, context, params, *, num_heads, qk_norm, eps=1e-6,
                    batch_block=None, approx_recip=True):
    B, S, D = x.shape
    Bc, L, Dc = context.shape
    assert Bc == B and D % num_heads == 0
    hd = D // num_heads
    scale = hd ** -0.5

    vmem_budget = _vmem_budget_bytes()

    if batch_block is None:
        batch_block = _pick_batch_block(B, S, L, D, Dc, num_heads, vmem_budget)
    Bt = batch_block
    assert B % Bt == 0

    # Guard: the full (Bt*H, S, L) f32 score tensor is kept resident (no S/L
    # tiling).  Refuse shapes that would blow VMEM instead of silently spilling.
    # TODO(synk): add a query-tile grid axis + online softmax for real DiT
    # sequence lengths instead of keeping the whole score tensor resident.
    if _step_bytes(Bt, S, L, D, Dc, num_heads) > vmem_budget:
        raise ValueError(
            "CrossAttention kernel footprint exceeds the VMEM budget; "
            "sequence/context lengths need S/L tiling with online softmax.")

    # Weights in bf16 for the MXU; biases / RMSNorm scales stay f32.
    wdt = jnp.bfloat16
    qw = params["qw"].astype(wdt)
    ow = params["ow"].astype(wdt)
    kvw = jnp.concatenate([params["kw"], params["vw"]], axis=1).astype(wdt)  # (Dc, 2D)
    kvb = jnp.concatenate([params["kb"], params["vb"]], axis=1)              # (1, 2D)

    # Wrapper-side 2-D flattening: the kernel never reshapes its I/O blocks.
    x2 = x.reshape(B * S, D)
    ctx2 = context.reshape(B * L, Dc)

    kernel = functools.partial(
        cross_attention_kernel,
        num_heads=num_heads, head_dim=hd, scale=scale, qk_norm=qk_norm,
        batch_block=Bt, seq_len=S, ctx_len=L, eps=eps, approx_recip=approx_recip)

    def full2(shape):
        return pl.BlockSpec(shape, lambda b: (0, 0))

    in_specs = [
        pl.BlockSpec((Bt * S, D), lambda b: (b, 0)),     # x (flattened)
        pl.BlockSpec((Bt * L, Dc), lambda b: (b, 0)),    # context (flattened)
        full2((D, D)), full2((1, D)),                    # q weight / bias
        full2((Dc, 2 * D)), full2((1, 2 * D)),           # fused kv weight / bias
        full2((D, D)), full2((1, D)),                    # o weight / bias
        full2((1, D)), full2((1, D)),                    # norm_q / norm_k weights
    ]
    out_specs = pl.BlockSpec((Bt * S, D), lambda b: (b, 0))

    out2 = pl.pallas_call(
        kernel,
        out_shape=jax.ShapeDtypeStruct((B * S, D), x.dtype),
        grid_spec=pltpu.PrefetchScalarGridSpec(
            num_scalar_prefetch=0,
            grid=(B // Bt,),
            in_specs=in_specs,
            out_specs=out_specs,
        ),
        compiler_params=pltpu.CompilerParams(
            dimension_semantics=("parallel",),
            vmem_limit_bytes=vmem_budget,
        ),
    )(x2, ctx2, qw, params["qb"], kvw, kvb, ow, params["ob"],
      params["nq"], params["nk"])

    return out2.reshape(B, S, D)


def ref_cross_attention(x, context, p, *, num_heads, qk_norm, eps=1e-6):
    """Pure-JAX f32 reference mirroring the PyTorch forward."""
    B, S, D = x.shape
    hd = D // num_heads
    q = x @ p["qw"] + p["qb"][0]
    k = context @ p["kw"] + p["kb"][0]
    v = context @ p["vw"] + p["vb"][0]
    if qk_norm:
        q = _rms_norm(q, p["nq"][0], eps)
        k = _rms_norm(k, p["nk"][0], eps)
    q = q.reshape(B, S, num_heads, hd).transpose(0, 2, 1, 3)
    k = k.reshape(B, -1, num_heads, hd).transpose(0, 2, 1, 3)
    v = v.reshape(B, -1, num_heads, hd).transpose(0, 2, 1, 3)
    attn = jnp.einsum("bhqd,bhkd->bhqk", q, k) * (hd ** -0.5)
    attn = jax.nn.softmax(attn, axis=-1)
    out = jnp.einsum("bhqk,bhkd->bhqd", attn, v)
    out = out.transpose(0, 2, 1, 3).reshape(B, S, D)
    return out @ p["ow"] + p["ob"][0]


if __name__ == "__main__":
    B, S, L = 2, 8, 8
    dim, context_dim, num_heads = 32, 16, 4
    qk_norm = True

    key = jax.random.PRNGKey(0)
    ks = jax.random.split(key, 12)

    params = {
        "qw": 0.05 * jax.random.normal(ks[0], (dim, dim), jnp.float32),
        "qb": 0.01 * jax.random.normal(ks[1], (1, dim), jnp.float32),
        "kw": 0.05 * jax.random.normal(ks[2], (context_dim, dim), jnp.float32),
        "kb": 0.01 * jax.random.normal(ks[3], (1, dim), jnp.float32),
        "vw": 0.05 * jax.random.normal(ks[4], (context_dim, dim), jnp.float32),
        "vb": 0.01 * jax.random.normal(ks[5], (1, dim), jnp.float32),
        "ow": 0.05 * jax.random.normal(ks[6], (dim, dim), jnp.float32),
        "ob": 0.01 * jax.random.normal(ks[7], (1, dim), jnp.float32),
        # RMSNorm weights (ones in the module; perturb to exercise scaling).
        "nq": 1.0 + 0.1 * jax.random.normal(ks[8], (1, dim), jnp.float32),
        "nk": 1.0 + 0.1 * jax.random.normal(ks[9], (1, dim), jnp.float32),
    }

    x = jax.random.normal(ks[10], (B, S, dim), jnp.float32)
    context = jax.random.normal(ks[11], (B, L, context_dim), jnp.float32)

    out = cross_attention(x, context, params, num_heads=num_heads, qk_norm=qk_norm)
    out = jax.block_until_ready(out)

    expected = ref_cross_attention(x, context, params, num_heads=num_heads, qk_norm=qk_norm)
    assert out.shape == (B, S, dim)
    # Tolerance widened for bf16 MXU inputs + approx reciprocal (f32 reference).
    assert jnp.allclose(out, expected, atol=3e-2, rtol=3e-2), "mismatch vs reference"

    print("KERNEL_OK")
</pallas_src>

<mosaic_0001>
module attributes {stable_mosaic.version = 11 : i64} {
  func.func @cross_attention_kernel(%arg0: i32, %arg1: memref<8x32xf32, #tpu.memory_space<vmem>>, %arg2: memref<8x16xf32, #tpu.memory_space<vmem>>, %arg3: memref<32x32xbf16, #tpu.memory_space<vmem>>, %arg4: memref<1x32xf32, #tpu.memory_space<vmem>>, %arg5: memref<16x64xbf16, #tpu.memory_space<vmem>>, %arg6: memref<1x64xf32, #tpu.memory_space<vmem>>, %arg7: memref<32x32xbf16, #tpu.memory_space<vmem>>, %arg8: memref<1x32xf32, #tpu.memory_space<vmem>>, %arg9: memref<1x32xf32, #tpu.memory_space<vmem>>, %arg10: memref<1x32xf32, #tpu.memory_space<vmem>>, %arg11: memref<8x32xf32, #tpu.memory_space<vmem>>) attributes {dimension_semantics = [#tpu.dimension_semantics<parallel>], iteration_bounds = array<i64: 2>, scalar_prefetch = 0 : i64, scratch_operands = 0 : i64, tpu.core_type = #tpu.core_type<tc>, window_params = [{transform_indices = @transform_0, window_bounds = array<i64: 8, 32>}, {transform_indices = @transform_1, window_bounds = array<i64: 8, 16>}, {pipeline_mode = #tpu.pipeline_mode<synchronous>, transform_indices = @transform_2, window_bounds = array<i64: 32, 32>}, {pipeline_mode = #tpu.pipeline_mode<synchronous>, transform_indices = @transform_3, window_bounds = array<i64: 1, 32>}, {pipeline_mode = #tpu.pipeline_mode<synchronous>, transform_indices = @transform_4, window_bounds = array<i64: 16, 64>}, {pipeline_mode = #tpu.pipeline_mode<synchronous>, transform_indices = @transform_5, window_bounds = array<i64: 1, 64>}, {pipeline_mode = #tpu.pipeline_mode<synchronous>, transform_indices = @transform_6, window_bounds = array<i64: 32, 32>}, {pipeline_mode = #tpu.pipeline_mode<synchronous>, transform_indices = @transform_7, window_bounds = array<i64: 1, 32>}, {pipeline_mode = #tpu.pipeline_mode<synchronous>, transform_indices = @transform_8, window_bounds = array<i64: 1, 32>}, {pipeline_mode = #tpu.pipeline_mode<synchronous>, transform_indices = @transform_9, window_bounds = array<i64: 1, 32>}, {transform_indices = @transform_10, window_bounds = array<i64: 8, 32>}]} {
    %c0 = arith.constant 0 : index
    %c0_0 = arith.constant 0 : index
    %0 = vector.load %arg1[%c0, %c0_0] : memref<8x32xf32, #tpu.memory_space<vmem>>, vector<8x32xf32>
    %1 = arith.truncf %0 : vector<8x32xf32> to vector<8x32xbf16>
    %c0_1 = arith.constant 0 : index
    %c0_2 = arith.constant 0 : index
    %2 = vector.load %arg2[%c0_1, %c0_2] : memref<8x16xf32, #tpu.memory_space<vmem>>, vector<8x16xf32>
    %3 = arith.truncf %2 : vector<8x16xf32> to vector<8x16xbf16>
    %c0_3 = arith.constant 0 : index
    %c0_4 = arith.constant 0 : index
    %4 = vector.load %arg3[%c0_3, %c0_4] : memref<32x32xbf16, #tpu.memory_space<vmem>>, vector<32x32xbf16>
    %cst = arith.constant dense<0.000000e+00> : vector<8x32xf32>
    %5 = tpu.matmul %1, %4, %cst {dimension_numbers = #tpu.dot_dimension_numbers<[1], [0], [0], [1], [0, 0, 1, 1], [], []>} : vector<8x32xbf16>, vector<32x32xbf16>, vector<8x32xf32> -> vector<8x32xf32>
    %c0_5 = arith.constant 0 : index
    %c0_6 = arith.constant 0 : index
    %6 = vector.load %arg4[%c0_5, %c0_6] : memref<1x32xf32, #tpu.memory_space<vmem>>, vector<1x32xf32>
    %7 = vector.shape_cast %6 : vector<1x32xf32> to vector<32xf32>
    %8 = vector.shape_cast %7 : vector<32xf32> to vector<1x32xf32>
    %9 = vector.broadcast %8 : vector<1x32xf32> to vector<8x32xf32>
    %10 = arith.addf %5, %9 : vector<8x32xf32>
    %c0_7 = arith.constant 0 : index
    %c0_8 = arith.constant 0 : index
    %11 = vector.load %arg5[%c0_7, %c0_8] : memref<16x64xbf16, #tpu.memory_space<vmem>>, vector<16x64xbf16>
    %cst_9 = arith.constant dense<0.000000e+00> : vector<8x64xf32>
    %12 = tpu.matmul %3, %11, %cst_9 {dimension_numbers = #tpu.dot_dimension_numbers<[1], [0], [0], [1], [0, 0, 1, 1], [], []>} : vector<8x16xbf16>, vector<16x64xbf16>, vector<8x64xf32> -> vector<8x64xf32>
    %c0_10 = arith.constant 0 : index
    %c0_11 = arith.constant 0 : index
    %13 = vector.load %arg6[%c0_10, %c0_11] : memref<1x64xf32, #tpu.memory_space<vmem>>, vector<1x64xf32>
    %14 = vector.shape_cast %13 : vector<1x64xf32> to vector<64xf32>
    %15 = vector.shape_cast %14 : vector<64xf32> to vector<1x64xf32>
    %16 = vector.broadcast %15 : vector<1x64xf32> to vector<8x64xf32>
    %17 = arith.addf %12, %16 : vector<8x64xf32>
    %18 = vector.extract_strided_slice %17 {offsets = [0, 0], sizes = [8, 32], strides = [1, 1]} : vector<8x64xf32> to vector<8x32xf32>
    %19 = vector.extract_strided_slice %17 {offsets = [0, 32], sizes = [8, 32], strides = [1, 1]} : vector<8x64xf32> to vector<8x32xf32>
    %c0_12 = arith.constant 0 : index
    %c0_13 = arith.constant 0 : index
    %20 = vector.load %arg9[%c0_12, %c0_13] : memref<1x32xf32, #tpu.memory_space<vmem>>, vector<1x32xf32>
    %21 = vector.shape_cast %20 : vector<1x32xf32> to vector<32xf32>
    %22 = arith.mulf %10, %10 : vector<8x32xf32>
    %cst_14 = arith.constant dense<0.000000e+00> : vector<8xf32>
    %23 = vector.multi_reduction <add>, %22, %cst_14 [1] : vector<8x32xf32> to vector<8xf32>
    %24 = vector.shape_cast %23 : vector<8xf32> to vector<8x1xf32>
    %cst_15 = arith.constant 3.200000e+01 : f32
    %25 = vector.broadcast %cst_15 : f32 to vector<8x1xf32>
    %26 = arith.divf %24, %25 : vector<8x1xf32>
    %cst_16 = arith.constant 9.99999997E-7 : f32
    %27 = vector.broadcast %cst_16 : f32 to vector<8x1xf32>
    %28 = arith.addf %26, %27 : vector<8x1xf32>
    %29 = math.rsqrt %28 : vector<8x1xf32>
    %30 = vector.broadcast %29 : vector<8x1xf32> to vector<8x32xf32>
    %31 = arith.mulf %10, %30 : vector<8x32xf32>
    %32 = vector.shape_cast %21 : vector<32xf32> to vector<1x32xf32>
    %33 = vector.broadcast %32 : vector<1x32xf32> to vector<8x32xf32>
    %34 = arith.mulf %31, %33 : vector<8x32xf32>
    %c0_17 = arith.constant 0 : index
    %c0_18 = arith.constant 0 : index
    %35 = vector.load %arg10[%c0_17, %c0_18] : memref<1x32xf32, #tpu.memory_space<vmem>>, vector<1x32xf32>
    %36 = vector.shape_cast %35 : vector<1x32xf32> to vector<32xf32>
    %37 = arith.mulf %18, %18 : vector<8x32xf32>
    %cst_19 = arith.constant dense<0.000000e+00> : vector<8xf32>
    %38 = vector.multi_reduction <add>, %37, %cst_19 [1] : vector<8x32xf32> to vector<8xf32>
    %39 = vector.shape_cast %38 : vector<8xf32> to vector<8x1xf32>
    %cst_20 = arith.constant 3.200000e+01 : f32
    %40 = vector.broadcast %cst_20 : f32 to vector<8x1xf32>
    %41 = arith.divf %39, %40 : vector<8x1xf32>
    %cst_21 = arith.constant 9.99999997E-7 : f32
    %42 = vector.broadcast %cst_21 : f32 to vector<8x1xf32>
    %43 = arith.addf %41, %42 : vector<8x1xf32>
    %44 = math.rsqrt %43 : vector<8x1xf32>
    %45 = vector.broadcast %44 : vector<8x1xf32> to vector<8x32xf32>
    %46 = arith.mulf %18, %45 : vector<8x32xf32>
    %47 = vector.shape_cast %36 : vector<32xf32> to vector<1x32xf32>
    %48 = vector.broadcast %47 : vector<1x32xf32> to vector<8x32xf32>
    %49 = arith.mulf %46, %48 : vector<8x32xf32>
    %cst_22 = arith.constant 0.353553385 : f32
    %50 = vector.broadcast %cst_22 : f32 to vector<8x32xf32>
    %51 = arith.mulf %34, %50 : vector<8x32xf32>
    %52 = vector.shape_cast %51 : vector<8x32xf32> to vector<1x8x32xf32>
    %53 = vector.extract_strided_slice %52 {offsets = [0, 0, 0], sizes = [1, 8, 8], strides = [1, 1, 1]} : vector<1x8x32xf32> to vector<1x8x8xf32>
    %54 = vector.extract_strided_slice %52 {offsets = [0, 0, 8], sizes = [1, 8, 8], strides = [1, 1, 1]} : vector<1x8x32xf32> to vector<1x8x8xf32>
    %55 = vector.extract_strided_slice %52 {offsets = [0, 0, 16], sizes = [1, 8, 8], strides = [1, 1, 1]} : vector<1x8x32xf32> to vector<1x8x8xf32>
    %56 = vector.extract_strided_slice %52 {offsets = [0, 0, 24], sizes = [1, 8, 8], strides = [1, 1, 1]} : vector<1x8x32xf32> to vector<1x8x8xf32>
    %57 = vector.shape_cast %53 : vector<1x8x8xf32> to vector<1x1x8x8xf32>
    %58 = vector.shape_cast %54 : vector<1x8x8xf32> to vector<1x1x8x8xf32>
    %59 = vector.shape_cast %55 : vector<1x8x8xf32> to vector<1x1x8x8xf32>
    %60 = vector.shape_cast %56 : vector<1x8x8xf32> to vector<1x1x8x8xf32>
    %61 = tpu.concatenate %57, %58, %59, %60 in 1 : vector<1x1x8x8xf32>, vector<1x1x8x8xf32>, vector<1x1x8x8xf32>, vector<1x1x8x8xf32> -> vector<1x4x8x8xf32>
    %62 = vector.shape_cast %61 : vector<1x4x8x8xf32> to vector<4x8x8xf32>
    %63 = arith.truncf %62 : vector<4x8x8xf32> to vector<4x8x8xbf16>
    %64 = vector.shape_cast %49 : vector<8x32xf32> to vector<1x8x32xf32>
    %65 = vector.extract_strided_slice %64 {offsets = [0, 0, 0], sizes = [1, 8, 8], strides = [1, 1, 1]} : vector<1x8x32xf32> to vector<1x8x8xf32>
    %66 = vector.extract_strided_slice %64 {offsets = [0, 0, 8], sizes = [1, 8, 8], strides = [1, 1, 1]} : vector<1x8x32xf32> to vector<1x8x8xf32>
    %67 = vector.extract_strided_slice %64 {offsets = [0, 0, 16], sizes = [1, 8, 8], strides = [1, 1, 1]} : vector<1x8x32xf32> to vector<1x8x8xf32>
    %68 = vector.extract_strided_slice %64 {offsets = [0, 0, 24], sizes = [1, 8, 8], strides = [1, 1, 1]} : vector<1x8x32xf32> to vector<1x8x8xf32>
    %69 = vector.shape_cast %65 : vector<1x8x8xf32> to vector<1x1x8x8xf32>
    %70 = vector.shape_cast %66 : vector<1x8x8xf32> to vector<1x1x8x8xf32>
    %71 = vector.shape_cast %67 : vector<1x8x8xf32> to vector<1x1x8x8xf32>
    %72 = vector.shape_cast %68 : vector<1x8x8xf32> to vector<1x1x8x8xf32>
    %73 = tpu.concatenate %69, %70, %71, %72 in 1 : vector<1x1x8x8xf32>, vector<1x1x8x8xf32>, vector<1x1x8x8xf32>, vector<1x1x8x8xf32> -> vector<1x4x8x8xf32>
    %74 = vector.shape_cast %73 : vector<1x4x8x8xf32> to vector<4x8x8xf32>
    %75 = arith.truncf %74 : vector<4x8x8xf32> to vector<4x8x8xbf16>
    %76 = vector.shape_cast %19 : vector<8x32xf32> to vector<1x8x32xf32>
    %77 = vector.extract_strided_slice %76 {offsets = [0, 0, 0], sizes = [1, 8, 8], strides = [1, 1, 1]} : vector<1x8x32xf32> to vector<1x8x8xf32>
    %78 = vector.extract_strided_slice %76 {offsets = [0, 0, 8], sizes = [1, 8, 8], strides = [1, 1, 1]} : vector<1x8x32xf32> to vector<1x8x8xf32>
    %79 = vector.extract_strided_slice %76 {offsets = [0, 0, 16], sizes = [1, 8, 8], strides = [1, 1, 1]} : vector<1x8x32xf32> to vector<1x8x8xf32>
    %80 = vector.extract_strided_slice %76 {offsets = [0, 0, 24], sizes = [1, 8, 8], strides = [1, 1, 1]} : vector<1x8x32xf32> to vector<1x8x8xf32>
    %81 = vector.shape_cast %77 : vector<1x8x8xf32> to vector<1x1x8x8xf32>
    %82 = vector.shape_cast %78 : vector<1x8x8xf32> to vector<1x1x8x8xf32>
    %83 = vector.shape_cast %79 : vector<1x8x8xf32> to vector<1x1x8x8xf32>
    %84 = vector.shape_cast %80 : vector<1x8x8xf32> to vector<1x1x8x8xf32>
    %85 = tpu.concatenate %81, %82, %83, %84 in 1 : vector<1x1x8x8xf32>, vector<1x1x8x8xf32>, vector<1x1x8x8xf32>, vector<1x1x8x8xf32> -> vector<1x4x8x8xf32>
    %86 = vector.shape_cast %85 : vector<1x4x8x8xf32> to vector<4x8x8xf32>
    %87 = arith.truncf %86 : vector<4x8x8xf32> to vector<4x8x8xbf16>
    %cst_23 = arith.constant dense<0.000000e+00> : vector<4x8x8xf32>
    %88 = tpu.matmul %63, %75, %cst_23 {dimension_numbers = #tpu.dot_dimension_numbers<[2], [2], [1], [1], [0, 0, 0, 1, 1, 1], [0], [0]>} : vector<4x8x8xbf16>, vector<4x8x8xbf16>, vector<4x8x8xf32> -> vector<4x8x8xf32>
    %cst_24 = arith.constant dense<0xFF800000> : vector<4x8xf32>
    %89 = vector.multi_reduction <maximumf>, %88, %cst_24 [2] : vector<4x8x8xf32> to vector<4x8xf32>
    %90 = vector.shape_cast %89 : vector<4x8xf32> to vector<4x8x1xf32>
    %91 = vector.broadcast %90 : vector<4x8x1xf32> to vector<4x8x8xf32>
    %92 = arith.subf %88, %91 : vector<4x8x8xf32>
    %93 = math.exp %92 : vector<4x8x8xf32>
    %cst_25 = arith.constant dense<0.000000e+00> : vector<4x8xf32>
    %94 = vector.multi_reduction <add>, %93, %cst_25 [2] : vector<4x8x8xf32> to vector<4x8xf32>
    %95 = vector.shape_cast %94 : vector<4x8xf32> to vector<4x8x1xf32>
    %96 = tpu.reciprocal %95 {approx = true} : vector<4x8x1xf32> -> vector<4x8x1xf32>
    %97 = vector.broadcast %96 : vector<4x8x1xf32> to vector<4x8x8xf32>
    %98 = arith.mulf %93, %97 : vector<4x8x8xf32>
    %99 = arith.truncf %98 : vector<4x8x8xf32> to vector<4x8x8xbf16>
    %cst_26 = arith.constant dense<0.000000e+00> : vector<4x8x8xf32>
    %100 = tpu.matmul %99, %87, %cst_26 {dimension_numbers = #tpu.dot_dimension_numbers<[2], [1], [1], [2], [0, 0, 0, 1, 1, 2], [0], [0]>} : vector<4x8x8xbf16>, vector<4x8x8xbf16>, vector<4x8x8xf32> -> vector<4x8x8xf32>
    %101 = vector.shape_cast %100 : vector<4x8x8xf32> to vector<1x4x8x8xf32>
    %102 = vector.extract_strided_slice %101 {offsets = [0, 0, 0, 0], sizes = [1, 1, 8, 8], strides = [1, 1, 1, 1]} : vector<1x4x8x8xf32> to vector<1x1x8x8xf32>
    %103 = vector.shape_cast %102 : vector<1x1x8x8xf32> to vector<1x8x8xf32>
    %104 = vector.extract_strided_slice %101 {offsets = [0, 1, 0, 0], sizes = [1, 1, 8, 8], strides = [1, 1, 1, 1]} : vector<1x4x8x8xf32> to vector<1x1x8x8xf32>
    %105 = vector.shape_cast %104 : vector<1x1x8x8xf32> to vector<1x8x8xf32>
    %106 = vector.extract_strided_slice %101 {offsets = [0, 2, 0, 0], sizes = [1, 1, 8, 8], strides = [1, 1, 1, 1]} : vector<1x4x8x8xf32> to vector<1x1x8x8xf32>
    %107 = vector.shape_cast %106 : vector<1x1x8x8xf32> to vector<1x8x8xf32>
    %108 = vector.extract_strided_slice %101 {offsets = [0, 3, 0, 0], sizes = [1, 1, 8, 8], strides = [1, 1, 1, 1]} : vector<1x4x8x8xf32> to vector<1x1x8x8xf32>
    %109 = vector.shape_cast %108 : vector<1x1x8x8xf32> to vector<1x8x8xf32>
    %110 = tpu.concatenate %103, %105, %107, %109 in 2 : vector<1x8x8xf32>, vector<1x8x8xf32>, vector<1x8x8xf32>, vector<1x8x8xf32> -> vector<1x8x32xf32>
    %111 = vector.shape_cast %110 : vector<1x8x32xf32> to vector<8x32xf32>
    %112 = arith.truncf %111 : vector<8x32xf32> to vector<8x32xbf16>
    %c0_27 = arith.constant 0 : index
    %c0_28 = arith.constant 0 : index
    %113 = vector.load %arg7[%c0_27, %c0_28] : memref<32x32xbf16, #tpu.memory_space<vmem>>, vector<32x32xbf16>
    %cst_29 = arith.constant dense<0.000000e+00> : vector<8x32xf32>
    %114 = tpu.matmul %112, %113, %cst_29 {dimension_numbers = #tpu.dot_dimension_numbers<[1], [0], [0], [1], [0, 0, 1, 1], [], []>} : vector<8x32xbf16>, vector<32x32xbf16>, vector<8x32xf32> -> vector<8x32xf32>
    %c0_30 = arith.constant 0 : index
    %c0_31 = arith.constant 0 : index
    %115 = vector.load %arg8[%c0_30, %c0_31] : memref<1x32xf32, #tpu.memory_space<vmem>>, vector<1x32xf32>
    %116 = vector.shape_cast %115 : vector<1x32xf32> to vector<32xf32>
    %117 = vector.shape_cast %116 : vector<32xf32> to vector<1x32xf32>
    %118 = vector.broadcast %117 : vector<1x32xf32> to vector<8x32xf32>
    %119 = arith.addf %114, %118 : vector<8x32xf32>
    %c0_32 = arith.constant 0 : index
    %c0_33 = arith.constant 0 : index
    %120 = vector.load %arg11[%c0_32, %c0_33] : memref<8x32xf32, #tpu.memory_space<vmem>>, vector<8x32xf32>
    tpu.vector_store %arg11[%c0_32, %c0_33], %119 {strides = array<i32>} : memref<8x32xf32, #tpu.memory_space<vmem>>, vector<8x32xf32>,
    return
  }
  func.func @transform_0(%arg0: i32) -> (i32, i32) {
    %c0_i32 = arith.constant 0 : i32
    %c0_i32_0 = arith.constant 0 : i32
    return %arg0, %c0_i32 : i32, i32
  }
  func.func @transform_1(%arg0: i32) -> (i32, i32) {
    %c0_i32 = arith.constant 0 : i32
    %c0_i32_0 = arith.constant 0 : i32
    return %arg0, %c0_i32 : i32, i32
  }
  func.func @transform_2(%arg0: i32) -> (i32, i32) {
    %c0_i32 = arith.constant 0 : i32
    %c0_i32_0 = arith.constant 0 : i32
    %c0_i32_1 = arith.constant 0 : i32
    return %c0_i32, %c0_i32_0 : i32, i32
  }
  func.func @transform_3(%arg0: i32) -> (i32, i32) {
    %c0_i32 = arith.constant 0 : i32
    %c0_i32_0 = arith.constant 0 : i32
    %c0_i32_1 = arith.constant 0 : i32
    return %c0_i32, %c0_i32_0 : i32, i32
  }
  func.func @transform_4(%arg0: i32) -> (i32, i32) {
    %c0_i32 = arith.constant 0 : i32
    %c0_i32_0 = arith.constant 0 : i32
    %c0_i32_1 = arith.constant 0 : i32
    return %c0_i32, %c0_i32_0 : i32, i32
  }
  func.func @transform_5(%arg0: i32) -> (i32, i32) {
    %c0_i32 = arith.constant 0 : i32
    %c0_i32_0 = arith.constant 0 : i32
    %c0_i32_1 = arith.constant 0 : i32
    return %c0_i32, %c0_i32_0 : i32, i32
  }
  func.func @transform_6(%arg0: i32) -> (i32, i32) {
    %c0_i32 = arith.constant 0 : i32
    %c0_i32_0 = arith.constant 0 : i32
    %c0_i32_1 = arith.constant 0 : i32
    return %c0_i32, %c0_i32_0 : i32, i32
  }
  func.func @transform_7(%arg0: i32) -> (i32, i32) {
    %c0_i32 = arith.constant 0 : i32
    %c0_i32_0 = arith.constant 0 : i32
    %c0_i32_1 = arith.constant 0 : i32
    return %c0_i32, %c0_i32_0 : i32, i32
  }
  func.func @transform_8(%arg0: i32) -> (i32, i32) {
    %c0_i32 = arith.constant 0 : i32
    %c0_i32_0 = arith.constant 0 : i32
    %c0_i32_1 = arith.constant 0 : i32
    return %c0_i32, %c0_i32_0 : i32, i32
  }
  func.func @transform_9(%arg0: i32) -> (i32, i32) {
    %c0_i32 = arith.constant 0 : i32
    %c0_i32_0 = arith.constant 0 : i32
    %c0_i32_1 = arith.constant 0 : i32
    return %c0_i32, %c0_i32_0 : i32, i32
  }
  func.func @transform_10(%arg0: i32) -> (i32, i32) {
    %c0_i32 = arith.constant 0 : i32
    %c0_i32_0 = arith.constant 0 : i32
    return %arg0, %c0_i32 : i32, i32
  }
}

</mosaic_0001>

<llo_original>
// kernel: tpu_custom_call.1
$region0: #{tpu_custom_call.1}
  #allocation0 [shape = 'u32[]', space=smem, size = 0x4, offset = 0x4, fixed_abs, tag = 'smem constant byte address 0x4 - core index']
  #allocation1 [shape = 'u32[144,128]{1,0:T(1,128)}', space=vmem, size = 0x12000, scoped, tag = 'internal scratch']
  %s0 = inlined_call_operand.hbm [shape: f32[16,32], index: 0, kind: input, shape index: {}]
  %s1 = inlined_call_operand.hbm [shape: f32[16,16], index: 1, kind: input, shape index: {}]
  %s2 = inlined_call_operand.hbm [shape: bf16[32,32], index: 2, kind: input, shape index: {}]
  %s3 = inlined_call_operand.vmem [shape: f32[1,32], index: 3, kind: input, shape index: {}]
  %s4 = inlined_call_operand.hbm [shape: bf16[16,64], index: 4, kind: input, shape index: {}]
  %s5 = inlined_call_operand.vmem [shape: f32[1,64], index: 5, kind: input, shape index: {}]
  %s6 = inlined_call_operand.vmem [shape: bf16[32,32], index: 6, kind: input, shape index: {}]
  %s7 = inlined_call_operand.vmem [shape: f32[1,32], index: 7, kind: input, shape index: {}]
  %s8 = inlined_call_operand.vmem [shape: f32[1,32], index: 8, kind: input, shape index: {}]
  %s9 = inlined_call_operand.vmem [shape: f32[1,32], index: 9, kind: input, shape index: {}]
  %s10 = inlined_call_operand.hbm [shape: f32[16,32], index: 10, kind: output, shape index: {}]
  %s11 = sld [smem:[#allocation0]]
  $region89: #{tpu_custom_call.1} parent=0
    _
  %s13 = ssub.s32 1, %s11
  %s14 = scalar_select 0, %s13, %s11
  $region1: #{tpu_custom_call.1} parent=0
    #allocation2 [shape = 'u8[8192]{0}', space=vmem, size = 0x2000, scoped, tag = 'input window, operand 0']
    #allocation3 [shape = 's32[2]{0}', space=sflag, size = 0x8, scoped, tag = 'scoped memory for tpu_custom_call.1']
    #allocation4 [shape = 's32[2]{0}', space=sflag, size = 0x8, scoped, tag = 'scoped memory for tpu_custom_call.1']
    #allocation5 [shape = 'u8[8192]{0}', space=vmem, size = 0x2000, scoped, tag = 'input window, operand 1']
    #allocation6 [shape = 's32[2]{0}', space=sflag, size = 0x8, scoped, tag = 'scoped memory for tpu_custom_call.1']
    #allocation7 [shape = 'u8[8192]{0}', space=vmem, size = 0x2000, scoped, tag = 'input window, operand 2, single buffered']
    #allocation8 [shape = 'u8[4096]{0}', space=vmem, size = 0x1000, scoped, tag = 'input window, operand 4, single buffered']
    #allocation9 [shape = 's32[1]{0}', space=sflag, size = 0x4, scoped, tag = 'scoped memory for tpu_custom_call.1']
    #allocation10 [shape = 'u8[8192]{0}', space=vmem, size = 0x2000, scoped, tag = 'output window, operand 0']
    %15 = vsyncpa [#allocation3], 0
    %s16 = scalar_lea.sflag [#allocation3], 1
    %17 = vsyncpa %s16, 0
    %18 = vsyncpa [#allocation6], 0
    %s19 = scalar_lea.sflag [#allocation6], 1
    %20 = vsyncpa %s19, 0
    %21 = vsyncpa [#allocation9], 0
    %22 = vsyncpa [#allocation4], 0
    %s23 = scalar_lea.sflag [#allocation4], 1
    %24 = vsyncpa %s23, 0
    loop: start=0, step=1, limit=4
    $region2: #{tpu_custom_call.1} parent=1 // loop_pre_header
      _
    $region3: #{tpu_custom_call.1} parent=1 // loop_header
      %s26 = sphi 0, %s30
      %p27 = scmp.ge.s32.totalorder %s26, 4
      %s36 = sphi 0, %s38
      %s39 = sphi 0, %s36
      %s40 = sphi 0, %s39
      %s56 = sphi 0, %s40
      %s62 = sphi 0, %s64
      %s65 = sphi 0, %s62
      %s66 = sphi 0, %s65
      %s82 = sphi 0, %s66
      %s86 = sphi 0, %s86
      %s88 = sphi 0, %s86
      %s89 = sphi 0, %s88
      %s103 = sphi 0, %s89
      %s107 = sphi 0, %s107
      %s109 = sphi 0, %s107
      %s110 = sphi 0, %s109
      %s124 = sphi 0, %s110
      %s128 = sphi 0, %s128
      %s130 = sphi 0, %s128
      %s131 = sphi 0, %s130
      %s145 = sphi 0, %s131
      %s149 = sphi 0, %s149
      %s151 = sphi 0, %s149
      %s152 = sphi 0, %s151
      %s166 = sphi 0, %s152
      %s170 = sphi 0, %s170
      %s172 = sphi 0, %s170
      %s173 = sphi 0, %s172
      %s187 = sphi 0, %s173
      %s191 = sphi 0, %s191
      %s193 = sphi 0, %s191
      %s194 = sphi 0, %s193
      %s208 = sphi 0, %s194
      %s212 = sphi 0, %s212
      %s214 = sphi 0, %s212
      %s215 = sphi 0, %s214
      %s229 = sphi 0, %s215
      %s233 = sphi 0, %s233
      %s235 = sphi 0, %s233
      %s236 = sphi 0, %s235
      %s250 = sphi 0, %s236
      %s256 = sphi 0, %s258
      %s259 = sphi 0, %s256
      %s260 = sphi 0, %s259
      %s276 = sphi 0, %s260
    $region4: #{tpu_custom_call.1} parent=1 // loop_header_branch
      %29 = sbr.rel (%p27) target = $region8
    $region5: #{tpu_custom_call.1} parent=1 // loop_body
      %s31 = ssub.s32 %s26, 1
      %s32 = ssub.s32 %s26, 2
      %s33 = sadd.s32 %s26, 1
      %s34 = ssub.s32 %s26, %s33
      %p35 = scmp.eq.s32.totalorder %s34, 0
      %s37 = sadd.s32 %s36, 1
      %s38 = scalar_select %p35, %s36, %s37
      %p41 = pneg %p35
      %p42 = scmp.eq.s32.totalorder %s26, 1
      %p43 = por %p41, %p42
      %p44 = scmp.ne.s32.totalorder %s36, %s39
      %p45 = scmp.eq.s32.totalorder %s26, 0
      %p46 = por %p44, %p45
      %p47 = scmp.ne.s32.totalorder %s36, %s39
      %p48 = scmp.eq.s32.totalorder %s31, 1
      %p49 = por %p47, %p48
      %p50 = scmp.ne.s32.totalorder %s39, %s40
      %p51 = scmp.eq.s32.totalorder %s31, 0
      %p52 = por %p50, %p51
      %p53 = scmp.ne.s32.totalorder %s39, %s40
      %p54 = scmp.eq.s32.totalorder %s32, 1
      %p55 = por %p53, %p54
      %p57 = scmp.ne.s32.totalorder %s40, %s56
      %p58 = scmp.eq.s32.totalorder %s32, 0
      %p59 = por %p57, %p58
      %s60 = ssub.s32 %s26, %s33
      %p61 = scmp.eq.s32.totalorder %s60, 0
      %s63 = sadd.s32 %s62, 1
      %s64 = scalar_select %p61, %s62, %s63
      %p67 = pneg %p61
      %p68 = scmp.eq.s32.totalorder %s26, 1
      %p69 = por %p67, %p68
      %p70 = scmp.ne.s32.totalorder %s62, %s65
      %p71 = scmp.eq.s32.totalorder %s26, 0
      %p72 = por %p70, %p71
      %p73 = scmp.ne.s32.totalorder %s62, %s65
      %p74 = scmp.eq.s32.totalorder %s31, 1
      %p75 = por %p73, %p74
      %p76 = scmp.ne.s32.totalorder %s65, %s66
      %p77 = scmp.eq.s32.totalorder %s31, 0
      %p78 = por %p76, %p77
      %p79 = scmp.ne.s32.totalorder %s65, %s66
      %p80 = scmp.eq.s32.totalorder %s32, 1
      %p81 = por %p79, %p80
      %p83 = scmp.ne.s32.totalorder %s66, %s82
      %p84 = scmp.eq.s32.totalorder %s32, 0
      %p85 = por %p83, %p84
      %s87 = sadd.s32 %s86, 1
      %p90 = scmp.eq.s32.totalorder %s26, 1
      %p91 = scmp.ne.s32.totalorder %s86, %s88
      %p92 = scmp.eq.s32.totalorder %s26, 0
      %p93 = por %p91, %p92
      %p94 = scmp.ne.s32.totalorder %s86, %s88
      %p95 = scmp.eq.s32.totalorder %s31, 1
      %p96 = por %p94, %p95
      %p97 = scmp.ne.s32.totalorder %s88, %s89
      %p98 = scmp.eq.s32.totalorder %s31, 0
      %p99 = por %p97, %p98
      %p100 = scmp.ne.s32.totalorder %s88, %s89
      %p101 = scmp.eq.s32.totalorder %s32, 1
      %p102 = por %p100, %p101
      %p104 = scmp.ne.s32.totalorder %s89, %s103
      %p105 = scmp.eq.s32.totalorder %s32, 0
      %p106 = por %p104, %p105
      %s108 = sadd.s32 %s107, 1
      %p111 = scmp.eq.s32.totalorder %s26, 1
      %p112 = scmp.ne.s32.totalorder %s107, %s109
      %p113 = scmp.eq.s32.totalorder %s26, 0
      %p114 = por %p112, %p113
      %p115 = scmp.ne.s32.totalorder %s107, %s109
      %p116 = scmp.eq.s32.totalorder %s31, 1
      %p117 = por %p115, %p116
      %p118 = scmp.ne.s32.totalorder %s109, %s110
      %p119 = scmp.eq.s32.totalorder %s31, 0
      %p120 = por %p118, %p119
      %p121 = scmp.ne.s32.totalorder %s109, %s110
      %p122 = scmp.eq.s32.totalorder %s32, 1
      %p123 = por %p121, %p122
      %p125 = scmp.ne.s32.totalorder %s110, %s124
      %p126 = scmp.eq.s32.totalorder %s32, 0
      %p127 = por %p125, %p126
      %s129 = sadd.s32 %s128, 1
      %p132 = scmp.eq.s32.totalorder %s26, 1
      %p133 = scmp.ne.s32.totalorder %s128, %s130
      %p134 = scmp.eq.s32.totalorder %s26, 0
      %p135 = por %p133, %p134
      %p136 = scmp.ne.s32.totalorder %s128, %s130
      %p137 = scmp.eq.s32.totalorder %s31, 1
      %p138 = por %p136, %p137
      %p139 = scmp.ne.s32.totalorder %s130, %s131
      %p140 = scmp.eq.s32.totalorder %s31, 0
      %p141 = por %p139, %p140
      %p142 = scmp.ne.s32.totalorder %s130, %s131
      %p143 = scmp.eq.s32.totalorder %s32, 1
      %p144 = por %p142, %p143
      %p146 = scmp.ne.s32.totalorder %s131, %s145
      %p147 = scmp.eq.s32.totalorder %s32, 0
      %p148 = por %p146, %p147
      %s150 = sadd.s32 %s149, 1
      %p153 = scmp.eq.s32.totalorder %s26, 1
      %p154 = scmp.ne.s32.totalorder %s149, %s151
      %p155 = scmp.eq.s32.totalorder %s26, 0
      %p156 = por %p154, %p155
      %p157 = scmp.ne.s32.totalorder %s149, %s151
      %p158 = scmp.eq.s32.totalorder %s31, 1
      %p159 = por %p157, %p158
      %p160 = scmp.ne.s32.totalorder %s151, %s152
      %p161 = scmp.eq.s32.totalorder %s31, 0
      %p162 = por %p160, %p161
      %p163 = scmp.ne.s32.totalorder %s151, %s152
      %p164 = scmp.eq.s32.totalorder %s32, 1
      %p165 = por %p163, %p164
      %p167 = scmp.ne.s32.totalorder %s152, %s166
      %p168 = scmp.eq.s32.totalorder %s32, 0
      %p169 = por %p167, %p168
      %s171 = sadd.s32 %s170, 1
      %p174 = scmp.eq.s32.totalorder %s26, 1
      %p175 = scmp.ne.s32.totalorder %s170, %s172
      %p176 = scmp.eq.s32.totalorder %s26, 0
      %p177 = por %p175, %p176
      %p178 = scmp.ne.s32.totalorder %s170, %s172
      %p179 = scmp.eq.s32.totalorder %s31, 1
      %p180 = por %p178, %p179
      %p181 = scmp.ne.s32.totalorder %s172, %s173
      %p182 = scmp.eq.s32.totalorder %s31, 0
      %p183 = por %p181, %p182
      %p184 = scmp.ne.s32.totalorder %s172, %s173
      %p185 = scmp.eq.s32.totalorder %s32, 1
      %p186 = por %p184, %p185
      %p188 = scmp.ne.s32.totalorder %s173, %s187
      %p189 = scmp.eq.s32.totalorder %s32, 0
      %p190 = por %p188, %p189
      %s192 = sadd.s32 %s191, 1
      %p195 = scmp.eq.s32.totalorder %s26, 1
      %p196 = scmp.ne.s32.totalorder %s191, %s193
      %p197 = scmp.eq.s32.totalorder %s26, 0
      %p198 = por %p196, %p197
      %p199 = scmp.ne.s32.totalorder %s191, %s193
      %p200 = scmp.eq.s32.totalorder %s31, 1
      %p201 = por %p199, %p200
      %p202 = scmp.ne.s32.totalorder %s193, %s194
      %p203 = scmp.eq.s32.totalorder %s31, 0
      %p204 = por %p202, %p203
      %p205 = scmp.ne.s32.totalorder %s193, %s194
      %p206 = scmp.eq.s32.totalorder %s32, 1
      %p207 = por %p205, %p206
      %p209 = scmp.ne.s32.totalorder %s194, %s208
      %p210 = scmp.eq.s32.totalorder %s32, 0
      %p211 = por %p209, %p210
      %s213 = sadd.s32 %s212, 1
      %p216 = scmp.eq.s32.totalorder %s26, 1
      %p217 = scmp.ne.s32.totalorder %s212, %s214
      %p218 = scmp.eq.s32.totalorder %s26, 0
      %p219 = por %p217, %p218
      %p220 = scmp.ne.s32.totalorder %s212, %s214
      %p221 = scmp.eq.s32.totalorder %s31, 1
      %p222 = por %p220, %p221
      %p223 = scmp.ne.s32.totalorder %s214, %s215
      %p224 = scmp.eq.s32.totalorder %s31, 0
      %p225 = por %p223, %p224
      %p226 = scmp.ne.s32.totalorder %s214, %s215
      %p227 = scmp.eq.s32.totalorder %s32, 1
      %p228 = por %p226, %p227
      %p230 = scmp.ne.s32.totalorder %s215, %s229
      %p231 = scmp.eq.s32.totalorder %s32, 0
      %p232 = por %p230, %p231
      %s234 = sadd.s32 %s233, 1
      %p237 = scmp.eq.s32.totalorder %s26, 1
      %p238 = scmp.ne.s32.totalorder %s233, %s235
      %p239 = scmp.eq.s32.totalorder %s26, 0
      %p240 = por %p238, %p239
      %p241 = scmp.ne.s32.totalorder %s233, %s235
      %p242 = scmp.eq.s32.totalorder %s31, 1
      %p243 = por %p241, %p242
      %p244 = scmp.ne.s32.totalorder %s235, %s236
      %p245 = scmp.eq.s32.totalorder %s31, 0
      %p246 = por %p244, %p245
      %p247 = scmp.ne.s32.totalorder %s235, %s236
      %p248 = scmp.eq.s32.totalorder %s32, 1
      %p249 = por %p247, %p248
      %p251 = scmp.ne.s32.totalorder %s236, %s250
      %p252 = scmp.eq.s32.totalorder %s32, 0
      %p253 = por %p251, %p252
      %s254 = ssub.s32 %s26, %s33
      %p255 = scmp.eq.s32.totalorder %s254, 0
      %s257 = sadd.s32 %s256, 1
      %s258 = scalar_select %p255, %s256, %s257
      %p261 = pneg %p255
      %p262 = scmp.eq.s32.totalorder %s26, 1
      %p263 = por %p261, %p262
      %p264 = scmp.ne.s32.totalorder %s256, %s259
      %p265 = scmp.eq.s32.totalorder %s26, 0
      %p266 = por %p264, %p265
      %p267 = scmp.ne.s32.totalorder %s256, %s259
      %p268 = scmp.eq.s32.totalorder %s31, 1
      %p269 = por %p267, %p268
      %p270 = scmp.ne.s32.totalorder %s259, %s260
      %p271 = scmp.eq.s32.totalorder %s31, 0
      %p272 = por %p270, %p271
      %p273 = scmp.ne.s32.totalorder %s259, %s260
      %p274 = scmp.eq.s32.totalorder %s32, 1
      %p275 = por %p273, %p274
      %p277 = scmp.ne.s32.totalorder %s260, %s276
      %p278 = scmp.eq.s32.totalorder %s32, 0
      %p279 = por %p277, %p278
      %p280 = scmp.le.s32.totalorder 1, %s26
      %p281 = scmp.lt.s32.totalorder %s26, 3
      %p282 = pnand %p280, %p281
      %p283 = pneg %p282
      // Predicated region
      $region9: #{tpu_custom_call.1} parent=5 // pred_check
        _
      $region10: #{tpu_custom_call.1} parent=5 // pred_check_branch
        %285 = sbr.rel (%p282) target = $region12
      $region11: #{tpu_custom_call.1} parent=5 // pred_region
        %s286 = ssub.s32 %s26, 1
        // Predicated region
        $region13: #{tpu_custom_call.1} parent=11 // pred_check
          %p287 = pneg %p99
        $region14: #{tpu_custom_call.1} parent=11 // pred_check_branch
          %289 = sbr.rel (%p287) target = $region16
        $region15: #{tpu_custom_call.1} parent=11 // pred_region
          %s291 = ssub.s32 256, 256
          %292 = vsyncadd [#allocation6], %s291
          %s293 = sshll.u32 [#allocation7], 4
          %s294 = int_to_ptr.vmem [resolvable:$true] %s293
          %299 = dma.hbm_to_vmem [thread:$0]  %s2, 256, %s294, [#allocation6], 64, 64, 4
        $region16: #{tpu_custom_call.1} parent=11 // pred_fallthru
          _
        // Predicated region
        $region17: #{tpu_custom_call.1} parent=11 // pred_check
          %p300 = pneg %p120
        $region18: #{tpu_custom_call.1} parent=11 // pred_check_branch
          %302 = sbr.rel (%p300) target = $region20
        $region19: #{tpu_custom_call.1} parent=11 // pred_region
          _
        $region20: #{tpu_custom_call.1} parent=11 // pred_fallthru
          _
        // Predicated region
        $region21: #{tpu_custom_call.1} parent=11 // pred_check
          %p303 = pneg %p141
        $region22: #{tpu_custom_call.1} parent=11 // pred_check_branch
          %305 = sbr.rel (%p303) target = $region24
        $region23: #{tpu_custom_call.1} parent=11 // pred_region
          %s307 = ssub.s32 128, 128
          %308 = vsyncadd [#allocation9], %s307
          %s309 = sshll.u32 [#allocation8], 4
          %s310 = int_to_ptr.vmem [resolvable:$true] %s309
          %315 = dma.hbm_to_vmem [thread:$0]  %s4, 128, %s310, [#allocation9], 64, 64, 4
        $region24: #{tpu_custom_call.1} parent=11 // pred_fallthru
          _
        // Predicated region
        $region25: #{tpu_custom_call.1} parent=11 // pred_check
          %p316 = pneg %p162
        $region26: #{tpu_custom_call.1} parent=11 // pred_check_branch
          %318 = sbr.rel (%p316) target = $region28
        $region27: #{tpu_custom_call.1} parent=11 // pred_region
          _
        $region28: #{tpu_custom_call.1} parent=11 // pred_fallthru
          _
        // Predicated region
        $region29: #{tpu_custom_call.1} parent=11 // pred_check
          %p319 = pneg %p183
        $region30: #{tpu_custom_call.1} parent=11 // pred_check_branch
          %321 = sbr.rel (%p319) target = $region32
        $region31: #{tpu_custom_call.1} parent=11 // pred_region
          _
        $region32: #{tpu_custom_call.1} parent=11 // pred_fallthru
          _
        // Predicated region
        $region33: #{tpu_custom_call.1} parent=11 // pred_check
          %p322 = pneg %p204
        $region34: #{tpu_custom_call.1} parent=11 // pred_check_branch
          %324 = sbr.rel (%p322) target = $region36
        $region35: #{tpu_custom_call.1} parent=11 // pred_region
          _
        $region36: #{tpu_custom_call.1} parent=11 // pred_fallthru
          _
        // Predicated region
        $region37: #{tpu_custom_call.1} parent=11 // pred_check
          %p325 = pneg %p225
        $region38: #{tpu_custom_call.1} parent=11 // pred_check_branch
          %327 = sbr.rel (%p325) target = $region40
        $region39: #{tpu_custom_call.1} parent=11 // pred_region
          _
        $region40: #{tpu_custom_call.1} parent=11 // pred_fallthru
          _
        // Predicated region
        $region41: #{tpu_custom_call.1} parent=11 // pred_check
          %p328 = pneg %p246
        $region42: #{tpu_custom_call.1} parent=11 // pred_check_branch
          %330 = sbr.rel (%p328) target = $region44
        $region43: #{tpu_custom_call.1} parent=11 // pred_region
          _
        $region44: #{tpu_custom_call.1} parent=11 // pred_fallthru
          _
      $region12: #{tpu_custom_call.1} parent=5 // pred_fallthru
        _
      %p331 = scmp.lt.s32.totalorder %s26, 2
      // Predicated region
      $region45: #{tpu_custom_call.1} parent=5 // pred_check
        %p332 = pneg %p331
      $region46: #{tpu_custom_call.1} parent=5 // pred_check_branch
        %334 = sbr.rel (%p332) target = $region48
      $region47: #{tpu_custom_call.1} parent=5 // pred_region
        // Predicated region
        $region49: #{tpu_custom_call.1} parent=47 // pred_check
          %p335 = pneg %p46
        $region50: #{tpu_custom_call.1} parent=47 // pred_check_branch
          %337 = sbr.rel (%p335) target = $region52
        $region51: #{tpu_custom_call.1} parent=47 // pred_region
          %s338 = sand.u32 %s36, 1
          %s339 = scalar_lea.sflag [#allocation3], %s338
          %s340 = sand.u32 %s36, 1
          %s341 = smul.addr %s340, 8
          %s342 = scalar_lea.vmem [#allocation2], %s341
          %s344 = ssub.s32 128, 128
          %345 = vsyncadd %s339, %s344
          %s346 = smul.addr %s26, 128
          %s347 = scalar_lea.hbm %s0, %s346
          %s349 = sshll.u32 %s342, 4
          %s350 = int_to_ptr.vmem [resolvable:$true] %s349
          %352 = dma.hbm_to_vmem [thread:$0]  %s347, 128, %s350, %s339
        $region52: #{tpu_custom_call.1} parent=47 // pred_fallthru
          _
        // Predicated region
        $region53: #{tpu_custom_call.1} parent=47 // pred_check
          %p353 = pneg %p72
        $region54: #{tpu_custom_call.1} parent=47 // pred_check_branch
          %355 = sbr.rel (%p353) target = $region56
        $region55: #{tpu_custom_call.1} parent=47 // pred_region
          %s356 = sand.u32 %s26, 1
          %s357 = scalar_lea.sflag [#allocation6], %s356
          %s358 = sand.u32 %s62, 1
          %s359 = smul.addr %s358, 8
          %s360 = scalar_lea.vmem [#allocation5], %s359
          %s362 = ssub.s32 128, 128
          %363 = vsyncadd %s357, %s362
          %s364 = smul.addr %s26, 128
          %s365 = scalar_lea.hbm %s1, %s364
          %s367 = sshll.u32 %s360, 4
          %s368 = int_to_ptr.vmem [resolvable:$true] %s367
          %370 = dma.hbm_to_vmem [thread:$0]  %s365, 128, %s368, %s357
        $region56: #{tpu_custom_call.1} parent=47 // pred_fallthru
          _
      $region48: #{tpu_custom_call.1} parent=5 // pred_fallthru
        _
      %p371 = scmp.le.s32.totalorder 1, %s26
      %p372 = scmp.lt.s32.totalorder %s26, 3
      %p373 = pnand %p371, %p372
      %p374 = pneg %p373
      // Predicated region
      $region57: #{tpu_custom_call.1} parent=5 // pred_check
        _
      $region58: #{tpu_custom_call.1} parent=5 // pred_check_branch
        %376 = sbr.rel (%p373) target = $region60
      $region59: #{tpu_custom_call.1} parent=5 // pred_region
        %s377 = ssub.s32 %s26, 1
        %s378 = sand.u32 %s39, 1
        %s379 = scalar_lea.sflag [#allocation3], %s378
        %s380 = sand.u32 %s39, 1
        %s381 = smul.addr %s380, 8
        %s382 = scalar_lea.vmem [#allocation2], %s381
        // Predicated region
        $region61: #{tpu_custom_call.1} parent=59 // pred_check
          %p383 = pneg %p52
        $region62: #{tpu_custom_call.1} parent=59 // pred_check_branch
          %385 = sbr.rel (%p383) target = $region64
        $region63: #{tpu_custom_call.1} parent=59 // pred_region
          %386 = dma.done %s379, 128
        $region64: #{tpu_custom_call.1} parent=59 // pred_fallthru
          _
        %s387 = sand.u32 %s31, 1
        %s388 = scalar_lea.sflag [#allocation6], %s387
        %s389 = sand.u32 %s65, 1
        %s390 = smul.addr %s389, 8
        %s391 = scalar_lea.vmem [#allocation5], %s390
        // Predicated region
        $region65: #{tpu_custom_call.1} parent=59 // pred_check
          %p392 = pneg %p78
        $region66: #{tpu_custom_call.1} parent=59 // pred_check_branch
          %394 = sbr.rel (%p392) target = $region68
        $region67: #{tpu_custom_call.1} parent=59 // pred_region
          %395 = dma.done %s388, 128
        $region68: #{tpu_custom_call.1} parent=59 // pred_fallthru
          _
        // Predicated region
        $region69: #{tpu_custom_call.1} parent=59 // pred_check
          %p396 = pneg %p99
        $region70: #{tpu_custom_call.1} parent=59 // pred_check_branch
          %398 = sbr.rel (%p396) target = $region72
        $region71: #{tpu_custom_call.1} parent=59 // pred_region
          %399 = dma.done [#allocation6], 256
        $region72: #{tpu_custom_call.1} parent=59 // pred_fallthru
          _
        // Predicated region
        $region73: #{tpu_custom_call.1} parent=59 // pred_check
          %p400 = pneg %p141
        $region74: #{tpu_custom_call.1} parent=59 // pred_check_branch
          %402 = sbr.rel (%p400) target = $region76
        $region75: #{tpu_custom_call.1} parent=59 // pred_region
          %403 = dma.done [#allocation9], 128
        $region76: #{tpu_custom_call.1} parent=59 // pred_fallthru
          _
        %s404 = sand.u32 %s39, 1
        %s405 = scalar_lea.sflag [#allocation3], %s404
        %s406 = sand.u32 %s39, 1
        %s407 = smul.addr %s406, 8
        %s408 = scalar_lea.vmem [#allocation2], %s407
        %p409 = pneg %p52
        %p410 = pneg %p49
        %s411 = sand.u32 %s31, 1
        %s412 = scalar_lea.sflag [#allocation6], %s411
        %s413 = sand.u32 %s65, 1
        %s414 = smul.addr %s413, 8
        %s415 = scalar_lea.vmem [#allocation5], %s414
        %p416 = pneg %p78
        %p417 = pneg %p75
        %p418 = pneg %p99
        %p419 = pneg %p96
        %p420 = pneg %p120
        %p421 = pneg %p117
        %p422 = pneg %p141
        %p423 = pneg %p138
        %p424 = pneg %p162
        %p425 = pneg %p159
        %p426 = pneg %p183
        %p427 = pneg %p180
        %p428 = pneg %p204
        %p429 = pneg %p201
        %p430 = pneg %p225
        %p431 = pneg %p222
        %p432 = pneg %p246
        %p433 = pneg %p243
        %p434 = pneg %p272
        %p435 = pneg %p269
        %s436 = sand.u32 %s259, 1
        %s437 = scalar_lea.sflag [#allocation4], %s436
        %s438 = sand.u32 %s259, 1
        %s439 = smul.addr %s438, 8
        %s440 = scalar_lea.vmem [#allocation10], %s439
        %v442 = vld [vmem:[%s382] sm:$0xff]
        %v443 = vpack.c.bf16 %v442, %v442
        %v444 = vld [vmem:[%s391] sm:$0xff]
        %v445 = vpack.c.bf16 %v444, %v444
        %v446 = vld [vmem:[#allocation7] sm:$0xf]
        %v447 = vld [vmem:[#allocation7 + $0x4] sm:$0xf]
        %v448 = vld [vmem:[#allocation7 + $0x8] sm:$0xf]
        %v449 = vld [vmem:[#allocation7 + $0xc] sm:$0xf]
        %v450 = vld [vmem:[%s3] sm:$0x1]
        %v452 = vlaneseq
        %v453 = vshrl.u32 %v452, 7
        %v454 = vsub.s32 0, %v453
        %v455 = vrot.slane %v450, %v454
        %v461 = vunpack.c.l.b16 %v446
        %v462 = vunpack.c.l.b16 %v447
        %v463 = vunpack.c.l.b16 %v448
        %v464 = vunpack.c.l.b16 %v449
        %v465 = vpack.c.b16 %v462, %v461
        %v466 = vpack.c.b16 %v464, %v463
        %vm469 = vcmask 261120
        %v471 = vsel %vm469, %v443, 0
        %473 = vmatprep.subr.bf16.mxu0 0
        %474 = vmatpush1.bf16.msra.mxu0 %v465
        %475 = vmatprep.subr.bf16.mxu0 0
        %476 = vmatpush1.bf16.msra.mxu0 %v466
        %477 = vmatprep.subr.bf16.mxu0 0
        %478 = vmatpush1.bf16.msra.mxu0 0
        %479 = vmatprep.subr.bf16.mxu0 0
        %480 = vmatpush1.bf16.msra.mxu0 0
        %481 = vmatprep.subr.bf16.mxu0 0
        %482 = vmatpush1.bf16.msra.mxu0 0
        %483 = vmatprep.subr.bf16.mxu0 0
        %484 = vmatpush1.bf16.msra.mxu0 0
        %485 = vmatprep.subr.bf16.mxu0 0
        %486 = vmatpush1.bf16.msra.mxu0 0
        %487 = vmatprep.subr.bf16.mxu0 0
        %488 = vmatpush1.bf16.msra.mxu0 0
        %489 = vmatprep.subr.bf16.mxu0 0
        %490 = vmatpush1.bf16.msra.mxu0 0
        %491 = vmatprep.subr.bf16.mxu0 0
        %492 = vmatpush1.bf16.msra.mxu0 0
        %493 = vmatprep.subr.bf16.mxu0 0
        %494 = vmatpush1.bf16.msra.mxu0 0
        %495 = vmatprep.subr.bf16.mxu0 0
        %496 = vmatpush1.bf16.msra.mxu0 0
        %497 = vmatprep.subr.bf16.mxu0 0
        %498 = vmatpush1.bf16.msra.mxu0 0
        %499 = vmatprep.subr.bf16.mxu0 0
        %500 = vmatpush1.bf16.msra.mxu0 0
        %501 = vmatprep.subr.bf16.mxu0 0
        %502 = vmatpush1.bf16.msra.mxu0 0
        %503 = vmatprep.subr.bf16.mxu0 0
        %504 = vmatpush1.bf16.msra.mxu0 0
        %505 = vmatprep.mubr.bf16.mxu0 0
        %506 = vmatmul.mubr.bf16.gmra.mrb[0].mxu0 %v471
        %v507 = vpop.f32.mrb[0].mxu0
        %v508 = vadd.f32 %v455, %v507
        %v509 = vpop.f32.mrb[0].mxu0
        %v510 = vpop.f32.mrb[0].mxu0
        %v511 = vpop.f32.mrb[0].mxu0
        %512 = vdwg.mxu0
        %v513 = vld [vmem:[#allocation8] sm:$0xf]
        %v514 = vld [vmem:[#allocation8 + $0x4] sm:$0xf]
        %v515 = vld [vmem:[%s5] sm:$0x1]
        %v517 = vlaneseq
        %v518 = vshrl.u32 %v517, 7
        %v519 = vsub.s32 0, %v518
        %v520 = vrot.slane %v515, %v519
        %v524 = vunpack.c.l.b16 %v513
        %v525 = vunpack.c.l.b16 %v514
        %v526 = vpack.c.b16 %v525, %v524
        %vm528 = vcmask 130048
        %v530 = vsel %vm528, %v445, 0
        %532 = vmatprep.subr.bf16.mxu0 0
        %533 = vmatpush1.bf16.msra.mxu0 %v526
        %534 = vmatprep.subr.bf16.mxu0 0
        %535 = vmatpush1.bf16.msra.mxu0 0
        %536 = vmatprep.subr.bf16.mxu0 0
        %537 = vmatpush1.bf16.msra.mxu0 0
        %538 = vmatprep.subr.bf16.mxu0 0
        %539 = vmatpush1.bf16.msra.mxu0 0
        %540 = vmatprep.subr.bf16.mxu0 0
        %541 = vmatpush1.bf16.msra.mxu0 0
        %542 = vmatprep.subr.bf16.mxu0 0
        %543 = vmatpush1.bf16.msra.mxu0 0
        %544 = vmatprep.subr.bf16.mxu0 0
        %545 = vmatpush1.bf16.msra.mxu0 0
        %546 = vmatprep.subr.bf16.mxu0 0
        %547 = vmatpush1.bf16.msra.mxu0 0
        %548 = vmatprep.subr.bf16.mxu0 0
        %549 = vmatpush1.bf16.msra.mxu0 0
        %550 = vmatprep.subr.bf16.mxu0 0
        %551 = vmatpush1.bf16.msra.mxu0 0
        %552 = vmatprep.subr.bf16.mxu0 0
        %553 = vmatpush1.bf16.msra.mxu0 0
        %554 = vmatprep.subr.bf16.mxu0 0
        %555 = vmatpush1.bf16.msra.mxu0 0
        %556 = vmatprep.subr.bf16.mxu0 0
        %557 = vmatpush1.bf16.msra.mxu0 0
        %558 = vmatprep.subr.bf16.mxu0 0
        %559 = vmatpush1.bf16.msra.mxu0 0
        %560 = vmatprep.subr.bf16.mxu0 0
        %561 = vmatpush1.bf16.msra.mxu0 0
        %562 = vmatprep.subr.bf16.mxu0 0
        %563 = vmatpush1.bf16.msra.mxu0 0
        %564 = vmatprep.mubr.bf16.mxu0 0
        %565 = vmatmul.mubr.bf16.gmra.mrb[0].mxu0 %v530
        %v566 = vpop.f32.mrb[0].mxu0
        %v567 = vadd.f32 %v520, %v566
        %v568 = vpop.f32.mrb[0].mxu0
        %v569 = vpop.f32.mrb[0].mxu0
        %v570 = vpop.f32.mrb[0].mxu0
        %571 = vdwg.mxu0
        %v572 = vld [vmem:[%s8] sm:$0x1]
        %v573 = vmul.f32 %v508, %v508
        %v574 = vsel %vm469, %v573, 0.0
        %575 = vadd.xlane.f32.xlu0 %v574
        %v576 = vpop.xlane.xlu0 %575
        %v577 = vrcp.pop 32.0
        %v578 = vmul.f32 %v576, %v577
        %v579 = vadd.f32 %v578, 1e-06
        %v580 = vrsqrt.pop %v579
        %v581 = vmul.f32 %v508, %v580
        %v583 = vlaneseq
        %v584 = vshrl.u32 %v583, 7
        %v585 = vsub.s32 0, %v584
        %v586 = vrot.slane %v572, %v585
        %v588 = vmul.f32 %v581, %v586
        %v589 = vld [vmem:[%s9] sm:$0x1]
        %v590 = vmul.f32 %v567, %v567
        %v591 = vsel %vm469, %v590, 0.0
        %592 = vadd.xlane.f32.xlu0 %v591
        %v593 = vpop.xlane.xlu0 %592
        %v594 = vmul.f32 %v593, %v577
        %v595 = vadd.f32 %v594, 1e-06
        %v596 = vrsqrt.pop %v595
        %v597 = vmul.f32 %v567, %v596
        %v599 = vlaneseq
        %v600 = vshrl.u32 %v599, 7
        %v601 = vsub.s32 0, %v600
        %v602 = vrot.slane %v589, %v601
        %v604 = vmul.f32 %v597, %v602
        %v605 = vmul.f32 %v588, 0.35355338
        %607 = vrot.lane.b32.xlu0 %v605, 120
        %v608 = vpop.permute.xlu0 %607
        %610 = vrot.lane.b32.xlu0 %v605, 112
        %v611 = vpop.permute.xlu0 %610
        %613 = vrot.lane.b32.xlu0 %v605, 104
        %v614 = vpop.permute.xlu0 %613
        %v616 = vpack.c.bf16 %v605, %v605
        %v617 = vpack.c.bf16 %v608, %v608
        %v618 = vpack.c.bf16 %v611, %v611
        %v619 = vpack.c.bf16 %v614, %v614
        %621 = vrot.lane.b32.xlu0 %v604, 120
        %v622 = vpop.permute.xlu0 %621
        %624 = vrot.lane.b32.xlu0 %v604, 112
        %v625 = vpop.permute.xlu0 %624
        %627 = vrot.lane.b32.xlu0 %v604, 104
        %v628 = vpop.permute.xlu0 %627
        %v630 = vpack.c.bf16 %v604, %v604
        %v631 = vpack.c.bf16 %v622, %v622
        %v632 = vpack.c.bf16 %v625, %v625
        %v633 = vpack.c.bf16 %v628, %v628
        %635 = vrot.lane.b32.xlu0 %v567, 120
        %v636 = vpop.permute.xlu0 %635
        %638 = vrot.lane.b32.xlu0 %v567, 112
        %v639 = vpop.permute.xlu0 %638
        %641 = vrot.lane.b32.xlu0 %v567, 104
        %v642 = vpop.permute.xlu0 %641
        %v644 = vpack.c.bf16 %v567, %v567
        %v645 = vpack.c.bf16 %v636, %v636
        %v646 = vpack.c.bf16 %v639, %v639
        %v647 = vpack.c.bf16 %v642, %v642
        %vm648 = vcmask 64512
        %v650 = vsel %vm648, %v616, 0
        %v653 = vsel %vm648, %v630, 0
        %655 = vmatprep.subr.bf16.mxu0 0
        %656 = vmatpush1.bf16.xpose.msra.mxu0 %v653
        %657 = vmatprep.subr.bf16.mxu0 0
        %658 = vmatpush1.bf16.xpose.msra.mxu0 0
        %659 = vmatprep.subr.bf16.mxu0 0
        %660 = vmatpush1.bf16.xpose.msra.mxu0 0
        %661 = vmatprep.subr.bf16.mxu0 0
        %662 = vmatpush1.bf16.xpose.msra.mxu0 0
        %663 = vmatprep.subr.bf16.mxu0 0
        %664 = vmatpush1.bf16.xpose.msra.mxu0 0
        %665 = vmatprep.subr.bf16.mxu0 0
        %666 = vmatpush1.bf16.xpose.msra.mxu0 0
        %667 = vmatprep.subr.bf16.mxu0 0
        %668 = vmatpush1.bf16.xpose.msra.mxu0 0
        %669 = vmatprep.subr.bf16.mxu0 0
        %670 = vmatpush1.bf16.xpose.msra.mxu0 0
        %671 = vmatprep.subr.bf16.mxu0 0
        %672 = vmatpush1.bf16.xpose.msra.mxu0 0
        %673 = vmatprep.subr.bf16.mxu0 0
        %674 = vmatpush1.bf16.xpose.msra.mxu0 0
        %675 = vmatprep.subr.bf16.mxu0 0
        %676 = vmatpush1.bf16.xpose.msra.mxu0 0
        %677 = vmatprep.subr.bf16.mxu0 0
        %678 = vmatpush1.bf16.xpose.msra.mxu0 0
        %679 = vmatprep.subr.bf16.mxu0 0
        %680 = vmatpush1.bf16.xpose.msra.mxu0 0
        %681 = vmatprep.subr.bf16.mxu0 0
        %682 = vmatpush1.bf16.xpose.msra.mxu0 0
        %683 = vmatprep.subr.bf16.mxu0 0
        %684 = vmatpush1.bf16.xpose.msra.mxu0 0
        %685 = vmatprep.subr.bf16.mxu0 0
        %686 = vmatpush1.bf16.xpose.msra.mxu0 0
        %687 = vmatprep.mubr.bf16.mxu0 0
        %688 = vmatmul.mubr.bf16.gmra.mrb[0].mxu0 %v650
        %v689 = vpop.f32.mrb[0].mxu0
        %v690 = vadd.f32 0.0, %v689
        %v691 = vpop.f32.mrb[0].mxu0
        %v692 = vpop.f32.mrb[0].mxu0
        %v693 = vpop.f32.mrb[0].mxu0
        %694 = vdwg.mxu0
        %v696 = vsel %vm648, %v617, 0
        %v699 = vsel %vm648, %v631, 0
        %701 = vmatprep.subr.bf16.mxu0 0
        %702 = vmatpush1.bf16.xpose.msra.mxu0 %v699
        %703 = vmatprep.subr.bf16.mxu0 0
        %704 = vmatpush1.bf16.xpose.msra.mxu0 0
        %705 = vmatprep.subr.bf16.mxu0 0
        %706 = vmatpush1.bf16.xpose.msra.mxu0 0
        %707 = vmatprep.subr.bf16.mxu0 0
        %708 = vmatpush1.bf16.xpose.msra.mxu0 0
        %709 = vmatprep.subr.bf16.mxu0 0
        %710 = vmatpush1.bf16.xpose.msra.mxu0 0
        %711 = vmatprep.subr.bf16.mxu0 0
        %712 = vmatpush1.bf16.xpose.msra.mxu0 0
        %713 = vmatprep.subr.bf16.mxu0 0
        %714 = vmatpush1.bf16.xpose.msra.mxu0 0
        %715 = vmatprep.subr.bf16.mxu0 0
        %716 = vmatpush1.bf16.xpose.msra.mxu0 0
        %717 = vmatprep.subr.bf16.mxu0 0
        %718 = vmatpush1.bf16.xpose.msra.mxu0 0
        %719 = vmatprep.subr.bf16.mxu0 0
        %720 = vmatpush1.bf16.xpose.msra.mxu0 0
        %721 = vmatprep.subr.bf16.mxu0 0
        %722 = vmatpush1.bf16.xpose.msra.mxu0 0
        %723 = vmatprep.subr.bf16.mxu0 0
        %724 = vmatpush1.bf16.xpose.msra.mxu0 0
        %725 = vmatprep.subr.bf16.mxu0 0
        %726 = vmatpush1.bf16.xpose.msra.mxu0 0
        %727 = vmatprep.subr.bf16.mxu0 0
        %728 = vmatpush1.bf16.xpose.msra.mxu0 0
        %729 = vmatprep.subr.bf16.mxu0 0
        %730 = vmatpush1.bf16.xpose.msra.mxu0 0
        %731 = vmatprep.subr.bf16.mxu0 0
        %732 = vmatpush1.bf16.xpose.msra.mxu0 0
        %733 = vmatprep.mubr.bf16.mxu0 0
        %734 = vmatmul.mubr.bf16.gmra.mrb[0].mxu0 %v696
        %v735 = vpop.f32.mrb[0].mxu0
        %v736 = vadd.f32 0.0, %v735
        %v737 = vpop.f32.mrb[0].mxu0
        %v738 = vpop.f32.mrb[0].mxu0
        %v739 = vpop.f32.mrb[0].mxu0
        %740 = vdwg.mxu0
        %v742 = vsel %vm648, %v618, 0
        %v745 = vsel %vm648, %v632, 0
        %747 = vmatprep.subr.bf16.mxu0 0
        %748 = vmatpush1.bf16.xpose.msra.mxu0 %v745
        %749 = vmatprep.subr.bf16.mxu0 0
        %750 = vmatpush1.bf16.xpose.msra.mxu0 0
        %751 = vmatprep.subr.bf16.mxu0 0
        %752 = vmatpush1.bf16.xpose.msra.mxu0 0
        %753 = vmatprep.subr.bf16.mxu0 0
        %754 = vmatpush1.bf16.xpose.msra.mxu0 0
        %755 = vmatprep.subr.bf16.mxu0 0
        %756 = vmatpush1.bf16.xpose.msra.mxu0 0
        %757 = vmatprep.subr.bf16.mxu0 0
        %758 = vmatpush1.bf16.xpose.msra.mxu0 0
        %759 = vmatprep.subr.bf16.mxu0 0
        %760 = vmatpush1.bf16.xpose.msra.mxu0 0
        %761 = vmatprep.subr.bf16.mxu0 0
        %762 = vmatpush1.bf16.xpose.msra.mxu0 0
        %763 = vmatprep.subr.bf16.mxu0 0
        %764 = vmatpush1.bf16.xpose.msra.mxu0 0
        %765 = vmatprep.subr.bf16.mxu0 0
        %766 = vmatpush1.bf16.xpose.msra.mxu0 0
        %767 = vmatprep.subr.bf16.mxu0 0
        %768 = vmatpush1.bf16.xpose.msra.mxu0 0
        %769 = vmatprep.subr.bf16.mxu0 0
        %770 = vmatpush1.bf16.xpose.msra.mxu0 0
        %771 = vmatprep.subr.bf16.mxu0 0
        %772 = vmatpush1.bf16.xpose.msra.mxu0 0
        %773 = vmatprep.subr.bf16.mxu0 0
        %774 = vmatpush1.bf16.xpose.msra.mxu0 0
        %775 = vmatprep.subr.bf16.mxu0 0
        %776 = vmatpush1.bf16.xpose.msra.mxu0 0
        %777 = vmatprep.subr.bf16.mxu0 0
        %778 = vmatpush1.bf16.xpose.msra.mxu0 0
        %779 = vmatprep.mubr.bf16.mxu0 0
        %780 = vmatmul.mubr.bf16.gmra.mrb[0].mxu0 %v742
        %v781 = vpop.f32.mrb[0].mxu0
        %v782 = vadd.f32 0.0, %v781
        %v783 = vpop.f32.mrb[0].mxu0
        %v784 = vpop.f32.mrb[0].mxu0
        %v785 = vpop.f32.mrb[0].mxu0
        %786 = vdwg.mxu0
        %v788 = vsel %vm648, %v619, 0
        %v791 = vsel %vm648, %v633, 0
        %793 = vmatprep.subr.bf16.mxu0 0
        %794 = vmatpush1.bf16.xpose.msra.mxu0 %v791
        %795 = vmatprep.subr.bf16.mxu0 0
        %796 = vmatpush1.bf16.xpose.msra.mxu0 0
        %797 = vmatprep.subr.bf16.mxu0 0
        %798 = vmatpush1.bf16.xpose.msra.mxu0 0
        %799 = vmatprep.subr.bf16.mxu0 0
        %800 = vmatpush1.bf16.xpose.msra.mxu0 0
        %801 = vmatprep.subr.bf16.mxu0 0
        %802 = vmatpush1.bf16.xpose.msra.mxu0 0
        %803 = vmatprep.subr.bf16.mxu0 0
        %804 = vmatpush1.bf16.xpose.msra.mxu0 0
        %805 = vmatprep.subr.bf16.mxu0 0
        %806 = vmatpush1.bf16.xpose.msra.mxu0 0
        %807 = vmatprep.subr.bf16.mxu0 0
        %808 = vmatpush1.bf16.xpose.msra.mxu0 0
        %809 = vmatprep.subr.bf16.mxu0 0
        %810 = vmatpush1.bf16.xpose.msra.mxu0 0
        %811 = vmatprep.subr.bf16.mxu0 0
        %812 = vmatpush1.bf16.xpose.msra.mxu0 0
        %813 = vmatprep.subr.bf16.mxu0 0
        %814 = vmatpush1.bf16.xpose.msra.mxu0 0
        %815 = vmatprep.subr.bf16.mxu0 0
        %816 = vmatpush1.bf16.xpose.msra.mxu0 0
        %817 = vmatprep.subr.bf16.mxu0 0
        %818 = vmatpush1.bf16.xpose.msra.mxu0 0
        %819 = vmatprep.subr.bf16.mxu0 0
        %820 = vmatpush1.bf16.xpose.msra.mxu0 0
        %821 = vmatprep.subr.bf16.mxu0 0
        %822 = vmatpush1.bf16.xpose.msra.mxu0 0
        %823 = vmatprep.subr.bf16.mxu0 0
        %824 = vmatpush1.bf16.xpose.msra.mxu0 0
        %825 = vmatprep.mubr.bf16.mxu0 0
        %826 = vmatmul.mubr.bf16.gmra.mrb[0].mxu0 %v788
        %v827 = vpop.f32.mrb[0].mxu0
        %v828 = vadd.f32 0.0, %v827
        %v829 = vpop.f32.mrb[0].mxu0
        %v830 = vpop.f32.mrb[0].mxu0
        %v831 = vpop.f32.mrb[0].mxu0
        %832 = vdwg.mxu0
        %v833 = vsel %vm648, %v690, -inf
        %834 = vmax.xlane.f32.xlu0 %v833
        %v835 = vpop.xlane.xlu0 %834
        %v836 = vsel %vm648, %v736, -inf
        %837 = vmax.xlane.f32.xlu0 %v836
        %v838 = vpop.xlane.xlu0 %837
        %v839 = vsel %vm648, %v782, -inf
        %840 = vmax.xlane.f32.xlu0 %v839
        %v841 = vpop.xlane.xlu0 %840
        %v842 = vsel %vm648, %v828, -inf
        %843 = vmax.xlane.f32.xlu0 %v842
        %v844 = vpop.xlane.xlu0 %843
        %v845 = vsub.f32 %v690, %v835
        %v846 = vsub.f32 %v736, %v838
        %v847 = vsub.f32 %v782, %v841
        %v848 = vsub.f32 %v828, %v844
        %v849 = vmul.f32 %v845, 1.442695
        %v850 = vpow.pop %v849
        %v851 = vmul.f32 %v846, 1.442695
        %v852 = vpow.pop %v851
        %v853 = vmul.f32 %v847, 1.442695
        %v854 = vpow.pop %v853
        %v855 = vmul.f32 %v848, 1.442695
        %v856 = vpow.pop %v855
        %v857 = vsel %vm648, %v850, 0.0
        %858 = vadd.xlane.f32.xlu0 %v857
        %v859 = vpop.xlane.xlu0 %858
        %v860 = vsel %vm648, %v852, 0.0
        %861 = vadd.xlane.f32.xlu0 %v860
        %v862 = vpop.xlane.xlu0 %861
        %v863 = vsel %vm648, %v854, 0.0
        %864 = vadd.xlane.f32.xlu0 %v863
        %v865 = vpop.xlane.xlu0 %864
        %v866 = vsel %vm648, %v856, 0.0
        %867 = vadd.xlane.f32.xlu0 %v866
        %v868 = vpop.xlane.xlu0 %867
        %v869 = vrcp.pop %v859
        %v870 = vrcp.pop %v862
        %v871 = vrcp.pop %v865
        %v872 = vrcp.pop %v868
        %v873 = vmul.f32 %v850, %v869
        %v874 = vmul.f32 %v852, %v870
        %v875 = vmul.f32 %v854, %v871
        %v876 = vmul.f32 %v856, %v872
        %v877 = vpack.c.bf16 %v873, %v873
        %v878 = vpack.c.bf16 %v874, %v874
        %v879 = vpack.c.bf16 %v875, %v875
        %v880 = vpack.c.bf16 %v876, %v876
        %882 = vrot.lane.b32.xlu0 %v644, 96
        %v883 = vpop.permute.xlu0 %882
        %v885 = vsel %vm648, %v877, 0
        %vm887 = vcmask 1043456
        %v889 = vsel %vm887, %v883, 0
        %891 = vmatprep.subr.bf16.mxu0 0
        %892 = vmatpush1.bf16.msra.mxu0 %v889
        %893 = vmatprep.subr.bf16.mxu0 0
        %894 = vmatpush1.bf16.msra.mxu0 0
        %895 = vmatprep.subr.bf16.mxu0 0
        %896 = vmatpush1.bf16.msra.mxu0 0
        %897 = vmatprep.subr.bf16.mxu0 0
        %898 = vmatpush1.bf16.msra.mxu0 0
        %899 = vmatprep.subr.bf16.mxu0 0
        %900 = vmatpush1.bf16.msra.mxu0 0
        %901 = vmatprep.subr.bf16.mxu0 0
        %902 = vmatpush1.bf16.msra.mxu0 0
        %903 = vmatprep.subr.bf16.mxu0 0
        %904 = vmatpush1.bf16.msra.mxu0 0
        %905 = vmatprep.subr.bf16.mxu0 0
        %906 = vmatpush1.bf16.msra.mxu0 0
        %907 = vmatprep.subr.bf16.mxu0 0
        %908 = vmatpush1.bf16.msra.mxu0 0
        %909 = vmatprep.subr.bf16.mxu0 0
        %910 = vmatpush1.bf16.msra.mxu0 0
        %911 = vmatprep.subr.bf16.mxu0 0
        %912 = vmatpush1.bf16.msra.mxu0 0
        %913 = vmatprep.subr.bf16.mxu0 0
        %914 = vmatpush1.bf16.msra.mxu0 0
        %915 = vmatprep.subr.bf16.mxu0 0
        %916 = vmatpush1.bf16.msra.mxu0 0
        %917 = vmatprep.subr.bf16.mxu0 0
        %918 = vmatpush1.bf16.msra.mxu0 0
        %919 = vmatprep.subr.bf16.mxu0 0
        %920 = vmatpush1.bf16.msra.mxu0 0
        %921 = vmatprep.subr.bf16.mxu0 0
        %922 = vmatpush1.bf16.msra.mxu0 0
        %923 = vmatprep.mubr.bf16.mxu0 0
        %924 = vmatmul.mubr.bf16.gmra.mrb[0].mxu0 %v885
        %v925 = vpop.f32.mrb[0].mxu0
        %v926 = vadd.f32 0.0, %v925
        %v927 = vpop.f32.mrb[0].mxu0
        %v928 = vpop.f32.mrb[0].mxu0
        %v929 = vpop.f32.mrb[0].mxu0
        %930 = vdwg.mxu0
        %932 = vrot.lane.b32.xlu0 %v645, 96
        %v933 = vpop.permute.xlu0 %932
        %v935 = vsel %vm648, %v878, 0
        %v938 = vsel %vm887, %v933, 0
        %940 = vmatprep.subr.bf16.mxu0 0
        %941 = vmatpush1.bf16.msra.mxu0 %v938
        %942 = vmatprep.subr.bf16.mxu0 0
        %943 = vmatpush1.bf16.msra.mxu0 0
        %944 = vmatprep.subr.bf16.mxu0 0
        %945 = vmatpush1.bf16.msra.mxu0 0
        %946 = vmatprep.subr.bf16.mxu0 0
        %947 = vmatpush1.bf16.msra.mxu0 0
        %948 = vmatprep.subr.bf16.mxu0 0
        %949 = vmatpush1.bf16.msra.mxu0 0
        %950 = vmatprep.subr.bf16.mxu0 0
        %951 = vmatpush1.bf16.msra.mxu0 0
        %952 = vmatprep.subr.bf16.mxu0 0
        %953 = vmatpush1.bf16.msra.mxu0 0
        %954 = vmatprep.subr.bf16.mxu0 0
        %955 = vmatpush1.bf16.msra.mxu0 0
        %956 = vmatprep.subr.bf16.mxu0 0
        %957 = vmatpush1.bf16.msra.mxu0 0
        %958 = vmatprep.subr.bf16.mxu0 0
        %959 = vmatpush1.bf16.msra.mxu0 0
        %960 = vmatprep.subr.bf16.mxu0 0
        %961 = vmatpush1.bf16.msra.mxu0 0
        %962 = vmatprep.subr.bf16.mxu0 0
        %963 = vmatpush1.bf16.msra.mxu0 0
        %964 = vmatprep.subr.bf16.mxu0 0
        %965 = vmatpush1.bf16.msra.mxu0 0
        %966 = vmatprep.subr.bf16.mxu0 0
        %967 = vmatpush1.bf16.msra.mxu0 0
        %968 = vmatprep.subr.bf16.mxu0 0
        %969 = vmatpush1.bf16.msra.mxu0 0
        %970 = vmatprep.subr.bf16.mxu0 0
        %971 = vmatpush1.bf16.msra.mxu0 0
        %972 = vmatprep.mubr.bf16.mxu0 0
        %973 = vmatmul.mubr.bf16.gmra.mrb[0].mxu0 %v935
        %v974 = vpop.f32.mrb[0].mxu0
        %v975 = vadd.f32 0.0, %v974
        %v976 = vpop.f32.mrb[0].mxu0
        %v977 = vpop.f32.mrb[0].mxu0
        %v978 = vpop.f32.mrb[0].mxu0
        %979 = vdwg.mxu0
        %981 = vrot.lane.b32.xlu0 %v646, 96
        %v982 = vpop.permute.xlu0 %981
        %v984 = vsel %vm648, %v879, 0
        %v987 = vsel %vm887, %v982, 0
        %989 = vmatprep.subr.bf16.mxu0 0
        %990 = vmatpush1.bf16.msra.mxu0 %v987
        %991 = vmatprep.subr.bf16.mxu0 0
        %992 = vmatpush1.bf16.msra.mxu0 0
        %993 = vmatprep.subr.bf16.mxu0 0
        %994 = vmatpush1.bf16.msra.mxu0 0
        %995 = vmatprep.subr.bf16.mxu0 0
        %996 = vmatpush1.bf16.msra.mxu0 0
        %997 = vmatprep.subr.bf16.mxu0 0
        %998 = vmatpush1.bf16.msra.mxu0 0
        %999 = vmatprep.subr.bf16.mxu0 0
        %1000 = vmatpush1.bf16.msra.mxu0 0
        %1001 = vmatprep.subr.bf16.mxu0 0
        %1002 = vmatpush1.bf16.msra.mxu0 0
        %1003 = vmatprep.subr.bf16.mxu0 0
        %1004 = vmatpush1.bf16.msra.mxu0 0
        %1005 = vmatprep.subr.bf16.mxu0 0
        %1006 = vmatpush1.bf16.msra.mxu0 0
        %1007 = vmatprep.subr.bf16.mxu0 0
        %1008 = vmatpush1.bf16.msra.mxu0 0
        %1009 = vmatprep.subr.bf16.mxu0 0
        %1010 = vmatpush1.bf16.msra.mxu0 0
        %1011 = vmatprep.subr.bf16.mxu0 0
        %1012 = vmatpush1.bf16.msra.mxu0 0
        %1013 = vmatprep.subr.bf16.mxu0 0
        %1014 = vmatpush1.bf16.msra.mxu0 0
        %1015 = vmatprep.subr.bf16.mxu0 0
        %1016 = vmatpush1.bf16.msra.mxu0 0
        %1017 = vmatprep.subr.bf16.mxu0 0
        %1018 = vmatpush1.bf16.msra.mxu0 0
        %1019 = vmatprep.subr.bf16.mxu0 0
        %1020 = vmatpush1.bf16.msra.mxu0 0
        %1021 = vmatprep.mubr.bf16.mxu0 0
        %1022 = vmatmul.mubr.bf16.gmra.mrb[0].mxu0 %v984
        %v1023 = vpop.f32.mrb[0].mxu0
        %v1024 = vadd.f32 0.0, %v1023
        %v1025 = vpop.f32.mrb[0].mxu0
        %v1026 = vpop.f32.mrb[0].mxu0
        %v1027 = vpop.f32.mrb[0].mxu0
        %1028 = vdwg.mxu0
        %1030 = vrot.lane.b32.xlu0 %v647, 96
        %v1031 = vpop.permute.xlu0 %1030
        %v1033 = vsel %vm648, %v880, 0
        %v1036 = vsel %vm887, %v1031, 0
        %1038 = vmatprep.subr.bf16.mxu0 0
        %1039 = vmatpush1.bf16.msra.mxu0 %v1036
        %1040 = vmatprep.subr.bf16.mxu0 0
        %1041 = vmatpush1.bf16.msra.mxu0 0
        %1042 = vmatprep.subr.bf16.mxu0 0
        %1043 = vmatpush1.bf16.msra.mxu0 0
        %1044 = vmatprep.subr.bf16.mxu0 0
        %1045 = vmatpush1.bf16.msra.mxu0 0
        %1046 = vmatprep.subr.bf16.mxu0 0
        %1047 = vmatpush1.bf16.msra.mxu0 0
        %1048 = vmatprep.subr.bf16.mxu0 0
        %1049 = vmatpush1.bf16.msra.mxu0 0
        %1050 = vmatprep.subr.bf16.mxu0 0
        %1051 = vmatpush1.bf16.msra.mxu0 0
        %1052 = vmatprep.subr.bf16.mxu0 0
        %1053 = vmatpush1.bf16.msra.mxu0 0
        %1054 = vmatprep.subr.bf16.mxu0 0
        %1055 = vmatpush1.bf16.msra.mxu0 0
        %1056 = vmatprep.subr.bf16.mxu0 0
        %1057 = vmatpush1.bf16.msra.mxu0 0
        %1058 = vmatprep.subr.bf16.mxu0 0
        %1059 = vmatpush1.bf16.msra.mxu0 0
        %1060 = vmatprep.subr.bf16.mxu0 0
        %1061 = vmatpush1.bf16.msra.mxu0 0
        %1062 = vmatprep.subr.bf16.mxu0 0
        %1063 = vmatpush1.bf16.msra.mxu0 0
        %1064 = vmatprep.subr.bf16.mxu0 0
        %1065 = vmatpush1.bf16.msra.mxu0 0
        %1066 = vmatprep.subr.bf16.mxu0 0
        %1067 = vmatpush1.bf16.msra.mxu0 0
        %1068 = vmatprep.subr.bf16.mxu0 0
        %1069 = vmatpush1.bf16.msra.mxu0 0
        %1070 = vmatprep.mubr.bf16.mxu0 0
        %1071 = vmatmul.mubr.bf16.gmra.mrb[0].mxu0 %v1033
        %v1072 = vpop.f32.mrb[0].mxu0
        %v1073 = vadd.f32 0.0, %v1072
        %v1074 = vpop.f32.mrb[0].mxu0
        %v1075 = vpop.f32.mrb[0].mxu0
        %v1076 = vpop.f32.mrb[0].mxu0
        %1077 = vdwg.mxu0
        %1079 = vrot.lane.b32.xlu0 %v975, 8
        %v1080 = vpop.permute.xlu0 %1079
        %1083 = vrot.lane.b32.xlu0 %v1024, 16
        %v1084 = vpop.permute.xlu0 %1083
        %1087 = vrot.lane.b32.xlu0 %v1073, 24
        %v1088 = vpop.permute.xlu0 %1087
        %v1090 = vsel %vm648, %v926, %v1080
        %v1091 = vsel %vm528, %v1090, %v1084
        %vm1092 = vcmask 195584
        %v1093 = vsel %vm1092, %v1091, %v1088
        %v1094 = vpack.c.bf16 %v1093, %v1093
        %v1095 = vld [vmem:[%s6] sm:$0xf]
        %v1096 = vld [vmem:[%s6 + $0x4] sm:$0xf]
        %v1097 = vld [vmem:[%s6 + $0x8] sm:$0xf]
        %v1098 = vld [vmem:[%s6 + $0xc] sm:$0xf]
        %v1099 = vld [vmem:[%s7] sm:$0x1]
        %v1101 = vlaneseq
        %v1102 = vshrl.u32 %v1101, 7
        %v1103 = vsub.s32 0, %v1102
        %v1104 = vrot.slane %v1099, %v1103
        %v1110 = vunpack.c.l.b16 %v1095
        %v1111 = vunpack.c.l.b16 %v1096
        %v1112 = vunpack.c.l.b16 %v1097
        %v1113 = vunpack.c.l.b16 %v1098
        %v1114 = vpack.c.b16 %v1111, %v1110
        %v1115 = vpack.c.b16 %v1113, %v1112
        %v1119 = vsel %vm469, %v1094, 0
        %1121 = vmatprep.subr.bf16.mxu0 0
        %1122 = vmatpush1.bf16.msra.mxu0 %v1114
        %1123 = vmatprep.subr.bf16.mxu0 0
        %1124 = vmatpush1.bf16.msra.mxu0 %v1115
        %1125 = vmatprep.subr.bf16.mxu0 0
        %1126 = vmatpush1.bf16.msra.mxu0 0
        %1127 = vmatprep.subr.bf16.mxu0 0
        %1128 = vmatpush1.bf16.msra.mxu0 0
        %1129 = vmatprep.subr.bf16.mxu0 0
        %1130 = vmatpush1.bf16.msra.mxu0 0
        %1131 = vmatprep.subr.bf16.mxu0 0
        %1132 = vmatpush1.bf16.msra.mxu0 0
        %1133 = vmatprep.subr.bf16.mxu0 0
        %1134 = vmatpush1.bf16.msra.mxu0 0
        %1135 = vmatprep.subr.bf16.mxu0 0
        %1136 = vmatpush1.bf16.msra.mxu0 0
        %1137 = vmatprep.subr.bf16.mxu0 0
        %1138 = vmatpush1.bf16.msra.mxu0 0
        %1139 = vmatprep.subr.bf16.mxu0 0
        %1140 = vmatpush1.bf16.msra.mxu0 0
        %1141 = vmatprep.subr.bf16.mxu0 0
        %1142 = vmatpush1.bf16.msra.mxu0 0
        %1143 = vmatprep.subr.bf16.mxu0 0
        %1144 = vmatpush1.bf16.msra.mxu0 0
        %1145 = vmatprep.subr.bf16.mxu0 0
        %1146 = vmatpush1.bf16.msra.mxu0 0
        %1147 = vmatprep.subr.bf16.mxu0 0
        %1148 = vmatpush1.bf16.msra.mxu0 0
        %1149 = vmatprep.subr.bf16.mxu0 0
        %1150 = vmatpush1.bf16.msra.mxu0 0
        %1151 = vmatprep.subr.bf16.mxu0 0
        %1152 = vmatpush1.bf16.msra.mxu0 0
        %1153 = vmatprep.mubr.bf16.mxu0 0
        %1154 = vmatmul.mubr.bf16.gmra.mrb[0].mxu0 %v1119
        %v1155 = vpop.f32.mrb[0].mxu0
        %v1156 = vadd.f32 %v1104, %v1155
        %v1157 = vpop.f32.mrb[0].mxu0
        %v1158 = vpop.f32.mrb[0].mxu0
        %v1159 = vpop.f32.mrb[0].mxu0
        %1160 = vdwg.mxu0
        %1161 = vst.msk [vmem:[%s440] sm:$0xff] %vm469, %v1156
        %s1162 = sand.u32 %s259, 1
        %s1163 = scalar_lea.sflag [#allocation4], %s1162
        %s1164 = sand.u32 %s259, 1
        %s1165 = smul.addr %s1164, 8
        %s1166 = scalar_lea.vmem [#allocation10], %s1165
        // Predicated region
        $region77: #{tpu_custom_call.1} parent=59 // pred_check
          %p1167 = pneg %p269
        $region78: #{tpu_custom_call.1} parent=59 // pred_check_branch
          %1169 = sbr.rel (%p1167) target = $region80
        $region79: #{tpu_custom_call.1} parent=59 // pred_region
          %s1171 = ssub.s32 128, 128
          %1172 = vsyncadd %s1163, %s1171
          %s1173 = smul.addr %s31, 128
          %s1174 = scalar_lea.hbm %s10, %s1173
          %s1176 = sshll.u32 %s1166, 4
          %s1177 = int_to_ptr.vmem [resolvable:$true] %s1176
          %1179 = dma.vmem_to_hbm [thread:$0]  %s1177, 128, %s1174, %s1163
        $region80: #{tpu_custom_call.1} parent=59 // pred_fallthru
          _
      $region60: #{tpu_custom_call.1} parent=5 // pred_fallthru
        _
      %p1180 = scmp.le.s32.totalorder 2, %s26
      // Predicated region
      $region81: #{tpu_custom_call.1} parent=5 // pred_check
        %p1181 = pneg %p1180
      $region82: #{tpu_custom_call.1} parent=5 // pred_check_branch
        %1183 = sbr.rel (%p1181) target = $region84
      $region83: #{tpu_custom_call.1} parent=5 // pred_region
        %s1184 = ssub.s32 %s26, 2
        // Predicated region
        $region85: #{tpu_custom_call.1} parent=83 // pred_check
          %p1185 = pneg %p275
        $region86: #{tpu_custom_call.1} parent=83 // pred_check_branch
          %1187 = sbr.rel (%p1185) target = $region88
        $region87: #{tpu_custom_call.1} parent=83 // pred_region
          %s1188 = sand.u32 %s260, 1
          %s1189 = scalar_lea.sflag [#allocation4], %s1188
          %s1190 = sand.u32 %s260, 1
          %s1191 = smul.addr %s1190, 8
          %s1192 = scalar_lea.vmem [#allocation10], %s1191
          %1193 = dma.done %s1189, 128
        $region88: #{tpu_custom_call.1} parent=83 // pred_fallthru
          _
      $region84: #{tpu_custom_call.1} parent=5 // pred_fallthru
        _
    $region6: #{tpu_custom_call.1} parent=1 // loop_footer
      %s30 = sadd.s32 1, %s26
    $region7: #{tpu_custom_call.1} parent=1 // loop_footer_branch
      %25 = sbr.rel target = $region3
    $region8: #{tpu_custom_call.1} parent=1 // loop_exit
      _
    %1194 = vsyncpa [#allocation3], 1
    %s1195 = scalar_lea.sflag [#allocation3], 1
    %1196 = vsyncpa %s1195, 1
    %1197 = vsyncpa [#allocation6], 1
    %s1198 = scalar_lea.sflag [#allocation6], 1
    %1199 = vsyncpa %s1198, 1
    %1200 = vsyncpa [#allocation9], 1
    %1201 = vsyncpa [#allocation4], 1
    %s1202 = scalar_lea.sflag [#allocation4], 1
    %1203 = vsyncpa %s1202, 1

</llo_original>
